<compile_context>
chip_gen: v7x
topology: tpu7x:2x2x1
jax: 0.10.0
libtpu: 0.0.40
codegen_flags: <defaults>
</compile_context>

<pallas_src>
import functools

import jax
import jax.numpy as jnp
from jax import lax
from jax.experimental import pallas as pl
from jax.experimental.pallas import tpu as pltpu


# ---------------------------------------------------------------------------
# Shared in-kernel helpers.
# ---------------------------------------------------------------------------
def _col_partials(x, col_ref):
    """Per-tile column max / sum-exp partials (for the dim-0 log-softmax)."""
    cmax = jnp.max(x, axis=0, keepdims=True)                         # (1, M)
    csum = jnp.sum(jnp.exp(x - cmax), axis=0, keepdims=True)         # (1, M)
    col_ref[0, 0:1, :] = cmax
    col_ref[0, 1:2, :] = csum


def _write_scalar_lanes(sc_ref, row_lse_part, diag_part):
    """Pack the two per-tile scalar partials into lanes 0/1 of one 128-lane row."""
    lane = lax.broadcasted_iota(jnp.int32, (1, 128), 1)
    sc_ref[0, 0:1, :] = (jnp.where(lane == 0, row_lse_part, 0.0) +
                         jnp.where(lane == 1, diag_part, 0.0))


# ---------------------------------------------------------------------------
# Kernel 1: partials from a precomputed similarity matrix x (module signature).
# ---------------------------------------------------------------------------
def _nsl_partials_kernel(x_ref, *rest, inv_t, n_rows, n_diag, diag_col0_max,
                         ragged, separate_diag):
    """Per-row-tile partial statistics.

    col_ref (1, 2, M): [0] column max of x/T over this tile's valid rows,
                       [1] column sum of exp(x/T - colmax) over valid rows.
    sc_ref  (1, 1, 128): lane 0 = sum of row-LSE for rows < n_diag,
                         lane 1 = sum of scaled diagonal entries.
    """
    if separate_diag:
        xd_ref, col_ref, sc_ref = rest
    else:
        col_ref, sc_ref = rest
        xd_ref = None

    tm, _ = x_ref.shape
    row_start = pl.program_id(0) * tm

    # Scale with a multiply (constant 1/T); keeps the EUP free for the exps.
    x = x_ref[...].astype(jnp.float32) * inv_t                       # (TM, M)

    # ---- column direction (log_softmax over dim 0) --------------------------
    if not ragged:
        _col_partials(x, col_ref)            # common path: no row mask at all
    else:
        is_last = row_start + tm > n_rows    # only the last tile has garbage rows

        @pl.when(jnp.logical_not(is_last))
        def _():
            _col_partials(x, col_ref)

        @pl.when(is_last)
        def _():
            grow = lax.broadcasted_iota(jnp.int32, (tm, 1), 0) + row_start
            _col_partials(jnp.where(grow < n_rows, x, -jnp.inf), col_ref)

    # ---- row direction + diagonal (skipped for tiles past the diagonal) -----
    sc_ref[0, 0:1, :] = jnp.zeros((1, 128), jnp.float32)

    @pl.when(row_start < n_diag)
    def _():
        grow = lax.broadcasted_iota(jnp.int32, (tm, 1), 0) + row_start  # (TM,1)
        on_diag = grow < n_diag

        # Exact per-row LSE over the full row; masked to diagonal rows.
        rmax = jnp.max(x, axis=1, keepdims=True)
        rlse = jnp.log(jnp.sum(jnp.exp(x - rmax), axis=1, keepdims=True)) + rmax
        row_lse_part = jnp.sum(jnp.where(on_diag, rlse, 0.0))           # scalar

        # Diagonal entries of this tile live in columns [row_start, row_start+TM):
        # mask only that (TM, TM) sub-block instead of the whole (TM, M) tile.
        if separate_diag:
            xd = xd_ref[...].astype(jnp.float32) * inv_t                # (TM, TM)
            # Whenever this branch runs the diag view is un-clamped, i.e.
            # col0 == row_start (clamp only keeps skipped tiles' DMA in-bounds).
            col0 = jnp.minimum(row_start, diag_col0_max)
        else:
            xd = x
            col0 = 0
        gcol = lax.broadcasted_iota(jnp.int32, xd.shape, 1) + col0
        dmask = (gcol == grow) & on_diag
        diag_part = jnp.sum(jnp.where(dmask, xd, 0.0))                  # scalar

        _write_scalar_lanes(sc_ref, row_lse_part, diag_part)


# ---------------------------------------------------------------------------
# Kernel 2: fused a @ b.T + loss partials (similarity matrix never hits HBM).
# ---------------------------------------------------------------------------
def _nsl_fused_kernel(a_ref, b_ref, bdiag_ref, col_ref, sc_ref, *,
                      inv_t, n_rows, n_diag, ragged):
    tm, _ = a_ref.shape
    row_start = pl.program_id(0) * tm

    a = a_ref[...].astype(jnp.float32) * inv_t      # scale the small (TM, D) side
    b = b_ref[...].astype(jnp.float32)              # (M, D), VMEM-resident

    # x/T row tile straight off the MXU (contraction on the D axis of both).
    x = lax.dot_general(a, b, (((1,), (1,)), ((), ())),
                        preferred_element_type=jnp.float32,
                        precision=lax.Precision.HIGHEST)              # (TM, M)

    if not ragged:
        _col_partials(x, col_ref)
    else:
        is_last = row_start + tm > n_rows

        @pl.when(jnp.logical_not(is_last))
        def _():
            _col_partials(x, col_ref)

        @pl.when(is_last)
        def _():
            grow = lax.broadcasted_iota(jnp.int32, (tm, 1), 0) + row_start
            _col_partials(jnp.where(grow < n_rows, x, -jnp.inf), col_ref)

    sc_ref[0, 0:1, :] = jnp.zeros((1, 128), jnp.float32)

    @pl.when(row_start < n_diag)
    def _():
        grow = lax.broadcasted_iota(jnp.int32, (tm, 1), 0) + row_start
        on_diag = grow < n_diag

        rmax = jnp.max(x, axis=1, keepdims=True)
        rlse = jnp.log(jnp.sum(jnp.exp(x - rmax), axis=1, keepdims=True)) + rmax
        row_lse_part = jnp.sum(jnp.where(on_diag, rlse, 0.0))

        # Whenever this branch runs, bdiag_ref holds rows [row_start, row_start+TM)
        # of b, so diag(x) is just a (TM, D) multiply + row sum -- no (TM, M) mask.
        bd = bdiag_ref[...].astype(jnp.float32)
        drow = jnp.sum(a * bd, axis=1, keepdims=True)   # already scaled by 1/T via `a`
        diag_part = jnp.sum(jnp.where(on_diag, drow, 0.0))

        _write_scalar_lanes(sc_ref, row_lse_part, diag_part)


# ---------------------------------------------------------------------------
# Host-side helpers (tile sizing, VMEM limits, partial combine).
# ---------------------------------------------------------------------------
def _sublane_multiple(dtype):
    # 8 for 4-byte, 16 for 2-byte, 32 for 1-byte dtypes.
    return max(8, 32 // jnp.dtype(dtype).itemsize)


def _round_block_rows(tm, n, dtype):
    if tm >= n:
        return n                                 # full-extent block is always legal
    sub = _sublane_multiple(dtype)
    return max(sub, (tm // sub) * sub)


def _vmem_limit_bytes(est_bytes):
    # Conservative across generations: v7x only has 64 MiB physical VMEM.
    return int(min(64 * 1024 * 1024, max(32 * 1024 * 1024, int(1.5 * est_bytes))))


def _combine_partials(col_part, sc_part, n_diag):
    """Tiny O(num_tiles * M) combine in plain JAX."""
    cmax_p = col_part[:, 0, :]                   # (T, M)
    csum_p = col_part[:, 1, :]                   # (T, M)
    row_lse_sum = jnp.sum(sc_part[:, 0, 0])      # sum of row LSE, rows < n_diag
    diag_sum = jnp.sum(sc_part[:, 0, 1])         # sum of scaled diagonal entries

    gmax = jnp.max(cmax_p, axis=0)                                     # (M,)
    gsum = jnp.sum(csum_p * jnp.exp(cmax_p - gmax[None, :]), axis=0)
    col_lse = jnp.log(gsum) + gmax                                     # (M,)
    col_lse_sum = jnp.sum(col_lse[:n_diag])

    # -mean(diag(i_logsm)) - mean(diag(j_logsm))
    return (row_lse_sum + col_lse_sum - 2.0 * diag_sum) / n_diag


# ---------------------------------------------------------------------------
# Public wrappers.
# ---------------------------------------------------------------------------
def norm_softmax_loss(x, temperature=0.05, block_rows=None):
    """Pallas implementation of NormSoftmaxLoss.forward(x). x: (N, M) float."""
    n, m = x.shape
    n_diag = min(n, m)
    inv_t = 1.0 / float(temperature)
    itemsize = jnp.dtype(x.dtype).itemsize

    if block_rows is None:
        # Size from the f32 working set (double-buffered native input rows plus
        # ~4 tile-sized f32 temporaries the compiler materializes), not from
        # x.dtype alone; multiple of 128 so the diagonal sub-block view is legal.
        per_row = 2 * m * itemsize + 4 * m * 4
        budget = 20 * 1024 * 1024        # leaves headroom in v7x's scoped VMEM
        block_rows = max(128, min(1024, (budget // per_row) // 128 * 128))
    tm = int(_round_block_rows(int(block_rows), n, x.dtype))

    num_tiles = int(pl.cdiv(n, tm))
    ragged = (n % tm) != 0

    # Separate (TM, TM) diagonal view of x: only when genuinely smaller than the
    # full row tile and TM satisfies the 128-lane BlockSpec constraint.
    separate_diag = (m > tm) and (tm % 128 == 0)
    if separate_diag:
        last_cb = int(pl.cdiv(m, tm)) - 1
        diag_col0_max = last_cb * tm
    else:
        last_cb = 0
        diag_col0_max = 0

    kernel = functools.partial(
        _nsl_partials_kernel, inv_t=inv_t, n_rows=n, n_diag=n_diag,
        diag_col0_max=diag_col0_max, ragged=ragged, separate_diag=separate_diag)

    in_specs = [pl.BlockSpec((tm, m), lambda i: (i, 0))]
    args = [x]
    if separate_diag:
        in_specs.append(
            pl.BlockSpec((tm, tm), lambda i: (i, jnp.minimum(i, last_cb))))
        args.append(x)

    est = (2 * tm * m * itemsize + 4 * tm * m * 4
           + (2 * tm * tm * itemsize if separate_diag else 0)
           + 4 * (2 * m + 128) * 4)

    col_part, sc_part = pl.pallas_call(
        kernel,
        out_shape=(jax.ShapeDtypeStruct((num_tiles, 2, m), jnp.float32),
                   jax.ShapeDtypeStruct((num_tiles, 1, 128), jnp.float32)),
        grid=(num_tiles,),
        in_specs=in_specs,
        out_specs=(pl.BlockSpec((1, 2, m), lambda i: (i, 0, 0)),
                   pl.BlockSpec((1, 1, 128), lambda i: (i, 0, 0))),
        compiler_params=pltpu.CompilerParams(
            dimension_semantics=("parallel",),   # row tiles shard across v7x's 2 TCs
            vmem_limit_bytes=_vmem_limit_bytes(est)),
    )(*args)

    return _combine_partials(col_part, sc_part, n_diag)


def norm_softmax_loss_fused(a_emb, b_emb, temperature=0.05, block_rows=None):
    """Fused a @ b.T + NormSoftmaxLoss: the N x M similarity matrix never
    round-trips HBM (top item of the performance review). a: (N, D), b: (M, D)."""
    n, d = a_emb.shape
    m, d_b = b_emb.shape
    assert d == d_b, "embedding dims must match"
    n_diag = min(n, m)
    inv_t = 1.0 / float(temperature)
    itemsize = jnp.dtype(a_emb.dtype).itemsize

    if block_rows is None:
        per_row = 3 * m * 4 + 6 * d * 4          # (TM, M) f32 temporaries dominate
        budget = 20 * 1024 * 1024
        block_rows = max(128, min(1024, (budget // per_row) // 128 * 128))
    tm = int(_round_block_rows(int(block_rows), n, a_emb.dtype))

    num_tiles = int(pl.cdiv(n, tm))
    ragged = (n % tm) != 0
    last_cb = int(pl.cdiv(m, tm)) - 1

    kernel = functools.partial(_nsl_fused_kernel, inv_t=inv_t, n_rows=n,
                               n_diag=n_diag, ragged=ragged)

    est = (2 * tm * d * itemsize + 2 * m * d * itemsize + 2 * tm * d * itemsize
           + 3 * tm * m * 4 + 4 * (2 * m + 128) * 4)

    col_part, sc_part = pl.pallas_call(
        kernel,
        out_shape=(jax.ShapeDtypeStruct((num_tiles, 2, m), jnp.float32),
                   jax.ShapeDtypeStruct((num_tiles, 1, 128), jnp.float32)),
        grid=(num_tiles,),
        in_specs=[
            pl.BlockSpec((tm, d), lambda i: (i, 0)),                 # rows of a
            pl.BlockSpec((m, d), lambda i: (0, 0)),                  # b, VMEM-resident
            pl.BlockSpec((tm, d), lambda i: (jnp.minimum(i, last_cb), 0)),  # diag rows of b
        ],
        out_specs=(pl.BlockSpec((1, 2, m), lambda i: (i, 0, 0)),
                   pl.BlockSpec((1, 1, 128), lambda i: (i, 0, 0))),
        compiler_params=pltpu.CompilerParams(
            dimension_semantics=("parallel",),
            vmem_limit_bytes=_vmem_limit_bytes(est)),
    )(a_emb, b_emb, b_emb)

    return _combine_partials(col_part, sc_part, n_diag)


def _reference(x, temperature=0.05):
    """Plain-JAX reference matching the PyTorch module exactly."""
    logits = x.astype(jnp.float32) / temperature
    i_logsm = jax.nn.log_softmax(logits, axis=1)
    j_logsm = jax.nn.log_softmax(logits.T, axis=1)
    nd = min(x.shape)
    loss_i = jnp.sum(jnp.diagonal(i_logsm)) / nd
    loss_j = jnp.sum(jnp.diagonal(j_logsm)) / nd
    return -loss_i - loss_j


if __name__ == "__main__":
    key = jax.random.PRNGKey(0)
    # Small non-square problem: 3 row tiles at block_rows=128, a ragged last
    # tile (320 = 2*128 + 64), diag length = min(N, M) = 320.
    N, M, D = 320, 512, 64
    k1, k2 = jax.random.split(key)
    a = jax.random.normal(k1, (N, D), dtype=jnp.float32)
    b = jax.random.normal(k2, (M, D), dtype=jnp.float32)
    a = a / jnp.linalg.norm(a, axis=1, keepdims=True)
    b = b / jnp.linalg.norm(b, axis=1, keepdims=True)
    # High-precision similarities so all paths see the same matrix.
    x = jnp.dot(a, b.T, precision=lax.Precision.HIGHEST)   # (N, M) cosine sims

    ref = _reference(x, temperature=0.05)

    # Module-equivalent forward on the precomputed similarity matrix
    # (multi-tile, ragged last tile, separate diagonal sub-block view).
    loss = jax.block_until_ready(
        norm_softmax_loss(x, temperature=0.05, block_rows=128))
    assert jnp.allclose(loss, ref, rtol=1e-4, atol=1e-4), (loss, ref)

    # Auto-sized tiling (single full-extent tile at this size, fallback mask path).
    loss_auto = jax.block_until_ready(norm_softmax_loss(x, temperature=0.05))
    assert jnp.allclose(loss_auto, ref, rtol=1e-4, atol=1e-4), (loss_auto, ref)

    # Fused similarity-matmul path (x never materialized in HBM).
    loss_fused = jax.block_until_ready(
        norm_softmax_loss_fused(a, b, temperature=0.05, block_rows=128))
    assert jnp.allclose(loss_fused, ref, rtol=2e-3, atol=2e-3), (loss_fused, ref)

    print("KERNEL_OK")
</pallas_src>

<mosaic_0001>
module attributes {stable_mosaic.version = 11 : i64} {
  func.func @_nsl_partials_kernel(%arg0: i32, %arg1: memref<128x512xf32, #tpu.memory_space<vmem>>, %arg2: memref<128x128xf32, #tpu.memory_space<vmem>>, %arg3: memref<1x2x512xf32, #tpu.memory_space<vmem>>, %arg4: memref<1x1x128xf32, #tpu.memory_space<vmem>>) attributes {dimension_semantics = [#tpu.dimension_semantics<parallel>], iteration_bounds = array<i64: 3>, scalar_prefetch = 0 : i64, scratch_operands = 0 : i64, tpu.core_type = #tpu.core_type<tc>, window_params = [{transform_indices = @transform_0, window_bounds = array<i64: 128, 512>}, {transform_indices = @transform_1, window_bounds = array<i64: 128, 128>}, {transform_indices = @transform_2, window_bounds = array<i64: 1, 2, 512>}, {transform_indices = @transform_3, window_bounds = array<i64: 1, 1, 128>}]} {
    %c128_i32 = arith.constant 128 : i32
    %0 = arith.muli %arg0, %c128_i32 : i32
    %c0 = arith.constant 0 : index
    %c0_0 = arith.constant 0 : index
    %1 = vector.load %arg1[%c0, %c0_0] : memref<128x512xf32, #tpu.memory_space<vmem>>, vector<128x512xf32>
    %cst = arith.constant 2.000000e+01 : f32
    %2 = vector.broadcast %cst : f32 to vector<128x512xf32>
    %3 = arith.mulf %1, %2 : vector<128x512xf32>
    %c128_i32_1 = arith.constant 128 : i32
    %4 = arith.addi %0, %c128_i32_1 : i32
    %c320_i32 = arith.constant 320 : i32
    %5 = arith.cmpi sgt, %4, %c320_i32 : i32
    %true = arith.constant true
    %6 = arith.xori %5, %true : i1
    %7 = arith.extui %6 : i1 to i32
    %c0_i32 = arith.constant 0 : i32
    %8 = arith.cmpi ne, %7, %c0_i32 : i32
    scf.if %8 {
      %cst_9 = arith.constant dense<0xFF800000> : vector<512xf32>
      %18 = vector.multi_reduction <maximumf>, %3, %cst_9 [0] : vector<128x512xf32> to vector<512xf32>
      %19 = vector.shape_cast %18 : vector<512xf32> to vector<1x512xf32>
      %20 = vector.broadcast %19 : vector<1x512xf32> to vector<128x512xf32>
      %21 = arith.subf %3, %20 : vector<128x512xf32>
      %22 = math.exp %21 : vector<128x512xf32>
      %cst_10 = arith.constant dense<0.000000e+00> : vector<512xf32>
      %23 = vector.multi_reduction <add>, %22, %cst_10 [0] : vector<128x512xf32> to vector<512xf32>
      %24 = vector.shape_cast %23 : vector<512xf32> to vector<1x512xf32>
      %c0_11 = arith.constant 0 : index
      %c0_12 = arith.constant 0 : index
      %c0_13 = arith.constant 0 : index
      %25 = vector.load %arg3[%c0_11, %c0_12, %c0_13] : memref<1x2x512xf32, #tpu.memory_space<vmem>>, vector<1x1x512xf32>
      %26 = vector.shape_cast %25 : vector<1x1x512xf32> to vector<1x512xf32>
      %27 = vector.shape_cast %19 : vector<1x512xf32> to vector<1x1x512xf32>
      tpu.vector_store %arg3[%c0_11, %c0_12, %c0_13], %27 {strides = array<i32>} : memref<1x2x512xf32, #tpu.memory_space<vmem>>, vector<1x1x512xf32>,
      %c0_14 = arith.constant 0 : index
      %c1 = arith.constant 1 : index
      %c0_15 = arith.constant 0 : index
      %28 = vector.load %arg3[%c0_14, %c1, %c0_15] : memref<1x2x512xf32, #tpu.memory_space<vmem>>, vector<1x1x512xf32>
      %29 = vector.shape_cast %28 : vector<1x1x512xf32> to vector<1x512xf32>
      %30 = vector.shape_cast %24 : vector<1x512xf32> to vector<1x1x512xf32>
      tpu.vector_store %arg3[%c0_14, %c1, %c0_15], %30 {strides = array<i32>} : memref<1x2x512xf32, #tpu.memory_space<vmem>>, vector<1x1x512xf32>,
    } else {
    }
    %9 = arith.extui %5 : i1 to i32
    %c0_i32_2 = arith.constant 0 : i32
    %10 = arith.cmpi ne, %9, %c0_i32_2 : i32
    scf.if %10 {
      %18 = tpu.iota {dimensions = array<i32: 0>} : vector<128x1xi32>
      %19 = vector.broadcast %0 : i32 to vector<128x1xi32>
      %20 = arith.addi %18, %19 : vector<128x1xi32>
      %c320_i32_9 = arith.constant 320 : i32
      %21 = vector.broadcast %c320_i32_9 : i32 to vector<128x1xi32>
      %22 = arith.cmpi slt, %20, %21 : vector<128x1xi32>
      %cst_10 = arith.constant 0xFF800000 : f32
      %23 = vector.shape_cast %22 : vector<128x1xi1> to vector<128x1xi1>
      %24 = vector.broadcast %23 : vector<128x1xi1> to vector<128x512xi1>
      %25 = vector.broadcast %cst_10 : f32 to vector<128x512xf32>
      %26 = arith.select %24, %3, %25 : vector<128x512xi1>, vector<128x512xf32>
      %cst_11 = arith.constant dense<0xFF800000> : vector<512xf32>
      %27 = vector.multi_reduction <maximumf>, %26, %cst_11 [0] : vector<128x512xf32> to vector<512xf32>
      %28 = vector.shape_cast %27 : vector<512xf32> to vector<1x512xf32>
      %29 = vector.broadcast %28 : vector<1x512xf32> to vector<128x512xf32>
      %30 = arith.subf %26, %29 : vector<128x512xf32>
      %31 = math.exp %30 : vector<128x512xf32>
      %cst_12 = arith.constant dense<0.000000e+00> : vector<512xf32>
      %32 = vector.multi_reduction <add>, %31, %cst_12 [0] : vector<128x512xf32> to vector<512xf32>
      %33 = vector.shape_cast %32 : vector<512xf32> to vector<1x512xf32>
      %c0_13 = arith.constant 0 : index
      %c0_14 = arith.constant 0 : index
      %c0_15 = arith.constant 0 : index
      %34 = vector.load %arg3[%c0_13, %c0_14, %c0_15] : memref<1x2x512xf32, #tpu.memory_space<vmem>>, vector<1x1x512xf32>
      %35 = vector.shape_cast %34 : vector<1x1x512xf32> to vector<1x512xf32>
      %36 = vector.shape_cast %28 : vector<1x512xf32> to vector<1x1x512xf32>
      tpu.vector_store %arg3[%c0_13, %c0_14, %c0_15], %36 {strides = array<i32>} : memref<1x2x512xf32, #tpu.memory_space<vmem>>, vector<1x1x512xf32>,
      %c0_16 = arith.constant 0 : index
      %c1 = arith.constant 1 : index
      %c0_17 = arith.constant 0 : index
      %37 = vector.load %arg3[%c0_16, %c1, %c0_17] : memref<1x2x512xf32, #tpu.memory_space<vmem>>, vector<1x1x512xf32>
      %38 = vector.shape_cast %37 : vector<1x1x512xf32> to vector<1x512xf32>
      %39 = vector.shape_cast %33 : vector<1x512xf32> to vector<1x1x512xf32>
      tpu.vector_store %arg3[%c0_16, %c1, %c0_17], %39 {strides = array<i32>} : memref<1x2x512xf32, #tpu.memory_space<vmem>>, vector<1x1x512xf32>,
    } else {
    }
    %cst_3 = arith.constant 0.000000e+00 : f32
    %11 = vector.broadcast %cst_3 : f32 to vector<1x128xf32>
    %c0_4 = arith.constant 0 : index
    %c0_5 = arith.constant 0 : index
    %c0_6 = arith.constant 0 : index
    %12 = vector.load %arg4[%c0_4, %c0_5, %c0_6] : memref<1x1x128xf32, #tpu.memory_space<vmem>>, vector<1x1x128xf32>
    %13 = vector.shape_cast %12 : vector<1x1x128xf32> to vector<1x128xf32>
    %14 = vector.shape_cast %11 : vector<1x128xf32> to vector<1x1x128xf32>
    tpu.vector_store %arg4[%c0_4, %c0_5, %c0_6], %14 {strides = array<i32>} : memref<1x1x128xf32, #tpu.memory_space<vmem>>, vector<1x1x128xf32>,
    %c320_i32_7 = arith.constant 320 : i32
    %15 = arith.cmpi slt, %0, %c320_i32_7 : i32
    %16 = arith.extui %15 : i1 to i32
    %c0_i32_8 = arith.constant 0 : i32
    %17 = arith.cmpi ne, %16, %c0_i32_8 : i32
    scf.if %17 {
      %18 = tpu.iota {dimensions = array<i32: 0>} : vector<128x1xi32>
      %19 = vector.broadcast %0 : i32 to vector<128x1xi32>
      %20 = arith.addi %18, %19 : vector<128x1xi32>
      %c320_i32_9 = arith.constant 320 : i32
      %21 = vector.broadcast %c320_i32_9 : i32 to vector<128x1xi32>
      %22 = arith.cmpi slt, %20, %21 : vector<128x1xi32>
      %cst_10 = arith.constant dense<0xFF800000> : vector<128xf32>
      %23 = vector.multi_reduction <maximumf>, %3, %cst_10 [1] : vector<128x512xf32> to vector<128xf32>
      %24 = vector.shape_cast %23 : vector<128xf32> to vector<128x1xf32>
      %25 = vector.broadcast %24 : vector<128x1xf32> to vector<128x512xf32>
      %26 = arith.subf %3, %25 : vector<128x512xf32>
      %27 = math.exp %26 : vector<128x512xf32>
      %cst_11 = arith.constant dense<0.000000e+00> : vector<128xf32>
      %28 = vector.multi_reduction <add>, %27, %cst_11 [1] : vector<128x512xf32> to vector<128xf32>
      %29 = vector.shape_cast %28 : vector<128xf32> to vector<128x1xf32>
      %30 = math.log %29 : vector<128x1xf32>
      %31 = arith.addf %30, %24 : vector<128x1xf32>
      %cst_12 = arith.constant 0.000000e+00 : f32
      %32 = vector.broadcast %cst_12 : f32 to vector<128x1xf32>
      %33 = arith.select %22, %31, %32 : vector<128x1xi1>, vector<128x1xf32>
      %34 = vector.shape_cast %33 : vector<128x1xf32> to vector<1x128x1xf32>
      %cst_13 = arith.constant dense<0.000000e+00> : vector<1xf32>
      %35 = vector.multi_reduction <add>, %34, %cst_13 [1, 2] : vector<1x128x1xf32> to vector<1xf32>
      %36 = vector.shape_cast %35 : vector<1xf32> to vector<1x1x1xf32>
      %37 = vector.extract %36[0, 0, 0] : f32 from vector<1x1x1xf32>
      %c0_14 = arith.constant 0 : index
      %c0_15 = arith.constant 0 : index
      %38 = vector.load %arg2[%c0_14, %c0_15] : memref<128x128xf32, #tpu.memory_space<vmem>>, vector<128x128xf32>
      %cst_16 = arith.constant 2.000000e+01 : f32
      %39 = vector.broadcast %cst_16 : f32 to vector<128x128xf32>
      %40 = arith.mulf %38, %39 : vector<128x128xf32>
      %c384_i32 = arith.constant 384 : i32
      %41 = arith.minsi %0, %c384_i32 : i32
      %42 = tpu.iota {dimensions = array<i32: 1>} : vector<128x128xi32>
      %43 = vector.broadcast %41 : i32 to vector<128x128xi32>
      %44 = arith.addi %42, %43 : vector<128x128xi32>
      %45 = vector.broadcast %20 : vector<128x1xi32> to vector<128x128xi32>
      %46 = arith.cmpi eq, %44, %45 : vector<128x128xi32>
      %47 = vector.broadcast %22 : vector<128x1xi1> to vector<128x128xi1>
      %48 = arith.andi %46, %47 : vector<128x128xi1>
      %cst_17 = arith.constant 0.000000e+00 : f32
      %49 = vector.broadcast %cst_17 : f32 to vector<128x128xf32>
      %50 = arith.select %48, %40, %49 : vector<128x128xi1>, vector<128x128xf32>
      %51 = vector.shape_cast %50 : vector<128x128xf32> to vector<1x128x128xf32>
      %cst_18 = arith.constant dense<0.000000e+00> : vector<1xf32>
      %52 = vector.multi_reduction <add>, %51, %cst_18 [1, 2] : vector<1x128x128xf32> to vector<1xf32>
      %53 = vector.shape_cast %52 : vector<1xf32> to vector<1x1x1xf32>
      %54 = vector.extract %53[0, 0, 0] : f32 from vector<1x1x1xf32>
      %55 = tpu.iota {dimensions = array<i32: 1>} : vector<1x128xi32>
      %c0_i32_19 = arith.constant 0 : i32
      %56 = vector.broadcast %c0_i32_19 : i32 to vector<1x128xi32>
      %57 = arith.cmpi eq, %55, %56 : vector<1x128xi32>
      %cst_20 = arith.constant 0.000000e+00 : f32
      %58 = vector.broadcast %37 : f32 to vector<1x128xf32>
      %59 = vector.broadcast %cst_20 : f32 to vector<1x128xf32>
      %60 = arith.select %57, %58, %59 : vector<1x128xi1>, vector<1x128xf32>
      %c1_i32 = arith.constant 1 : i32
      %61 = vector.broadcast %c1_i32 : i32 to vector<1x128xi32>
      %62 = arith.cmpi eq, %55, %61 : vector<1x128xi32>
      %cst_21 = arith.constant 0.000000e+00 : f32
      %63 = vector.broadcast %54 : f32 to vector<1x128xf32>
      %64 = vector.broadcast %cst_21 : f32 to vector<1x128xf32>
      %65 = arith.select %62, %63, %64 : vector<1x128xi1>, vector<1x128xf32>
      %66 = arith.addf %60, %65 : vector<1x128xf32>
      %c0_22 = arith.constant 0 : index
      %c0_23 = arith.constant 0 : index
      %c0_24 = arith.constant 0 : index
      %67 = vector.load %arg4[%c0_22, %c0_23, %c0_24] : memref<1x1x128xf32, #tpu.memory_space<vmem>>, vector<1x1x128xf32>
      %68 = vector.shape_cast %67 : vector<1x1x128xf32> to vector<1x128xf32>
      %69 = vector.shape_cast %66 : vector<1x128xf32> to vector<1x1x128xf32>
      tpu.vector_store %arg4[%c0_22, %c0_23, %c0_24], %69 {strides = array<i32>} : memref<1x1x128xf32, #tpu.memory_space<vmem>>, vector<1x1x128xf32>,
    } else {
    }
    return
  }
  func.func @transform_0(%arg0: i32) -> (i32, i32) {
    %c0_i32 = arith.constant 0 : i32
    %c0_i32_0 = arith.constant 0 : i32
    return %arg0, %c0_i32 : i32, i32
  }
  func.func @transform_1(%arg0: i32) -> (i32, i32) {
    %c3_i32 = arith.constant 3 : i32
    %0 = arith.minsi %arg0, %c3_i32 : i32
    %c0_i32 = arith.constant 0 : i32
    return %arg0, %0 : i32, i32
  }
  func.func @transform_2(%arg0: i32) -> (i32, i32, i32) {
    %c0_i32 = arith.constant 0 : i32
    %c0_i32_0 = arith.constant 0 : i32
    %c0_i32_1 = arith.constant 0 : i32
    return %arg0, %c0_i32, %c0_i32_0 : i32, i32, i32
  }
  func.func @transform_3(%arg0: i32) -> (i32, i32, i32) {
    %c0_i32 = arith.constant 0 : i32
    %c0_i32_0 = arith.constant 0 : i32
    %c0_i32_1 = arith.constant 0 : i32
    return %arg0, %c0_i32, %c0_i32_0 : i32, i32, i32
  }
}

</mosaic_0001>

<llo_original>
// kernel: tpu_custom_call.1
$region0: #{tpu_custom_call.1}
  #allocation0 [shape = 'u32[]', space=smem, size = 0x4, offset = 0x4, fixed_abs, tag = 'smem constant byte address 0x4 - core index']
  #allocation1 [shape = 'u32[144,128]{1,0:T(1,128)}', space=vmem, size = 0x12000, scoped, tag = 'internal scratch']
  %s0 = inlined_call_operand.hbm [shape: f32[320,512], index: 0, kind: input, shape index: {}]
  %s1 = inlined_call_operand.hbm [shape: f32[320,512], index: 1, kind: input, shape index: {}]
  %s2 = inlined_call_operand.hbm [shape: f32[3,2,512], index: 2, kind: output, shape index: {0}]
  %s3 = inlined_call_operand.hbm [shape: f32[3,1,128], index: 3, kind: output, shape index: {1}]
  %4 = xla_tuple %s2, %s3
  %s5 = sld [smem:[#allocation0]]
  $region69: #{tpu_custom_call.1} parent=0
    _
  %s7 = ssub.s32 1, %s5
  %s8 = scalar_select 0, %s7, %s5
  $region1: #{tpu_custom_call.1} parent=0
    #allocation2 [shape = 'u8[524288]{0}', space=vmem, size = 0x80000, scoped, tag = 'input window, operand 0']
    #allocation3 [shape = 's32[2]{0}', space=sflag, size = 0x8, scoped, tag = 'scoped memory for tpu_custom_call.1']
    #allocation4 [shape = 's32[2]{0}', space=sflag, size = 0x8, scoped, tag = 'scoped memory for tpu_custom_call.1']
    #allocation5 [shape = 'u8[131072]{0}', space=vmem, size = 0x20000, scoped, tag = 'input window, operand 1']
    #allocation6 [shape = 's32[2]{0}', space=sflag, size = 0x8, scoped, tag = 'scoped memory for tpu_custom_call.1']
    #allocation7 [shape = 'u8[8192]{0}', space=vmem, size = 0x2000, scoped, tag = 'output window, operand 0']
    #allocation8 [shape = 'u8[1024]{0}', space=vmem, size = 0x400, scoped, tag = 'output window, operand 1']
    #allocation9 [shape = 's32[2]{0}', space=sflag, size = 0x8, scoped, tag = 'scoped memory for tpu_custom_call.1']
    %9 = vsyncpa [#allocation3], 0
    %s10 = scalar_lea.sflag [#allocation3], 1
    %11 = vsyncpa %s10, 0
    %12 = vsyncpa [#allocation6], 0
    %s13 = scalar_lea.sflag [#allocation6], 1
    %14 = vsyncpa %s13, 0
    %15 = vsyncpa [#allocation4], 0
    %s16 = scalar_lea.sflag [#allocation4], 1
    %17 = vsyncpa %s16, 0
    %18 = vsyncpa [#allocation9], 0
    %s19 = scalar_lea.sflag [#allocation9], 1
    %20 = vsyncpa %s19, 0
    loop: start=0, step=1, limit=5
    $region2: #{tpu_custom_call.1} parent=1 // loop_pre_header
      _
    $region3: #{tpu_custom_call.1} parent=1 // loop_header
      %s22 = sphi 0, %s26
      %p23 = scmp.ge.s32.totalorder %s22, 5
      %s32 = sphi 0, %s34
      %s35 = sphi 0, %s32
      %s36 = sphi 0, %s35
      %s52 = sphi 0, %s36
      %s64 = sphi 0, %s66
      %s67 = sphi 0, %s64
      %s68 = sphi 0, %s67
      %s84 = sphi 0, %s68
      %s90 = sphi 0, %s92
      %s93 = sphi 0, %s90
      %s94 = sphi 0, %s93
      %s110 = sphi 0, %s94
      %s116 = sphi 0, %s118
      %s119 = sphi 0, %s116
      %s120 = sphi 0, %s119
      %s136 = sphi 0, %s120
    $region4: #{tpu_custom_call.1} parent=1 // loop_header_branch
      %25 = sbr.rel (%p23) target = $region8
    $region5: #{tpu_custom_call.1} parent=1 // loop_body
      %s27 = ssub.s32 %s22, 1
      %s28 = ssub.s32 %s22, 2
      %s29 = sadd.s32 %s22, 1
      %s30 = ssub.s32 %s22, %s29
      %p31 = scmp.eq.s32.totalorder %s30, 0
      %s33 = sadd.s32 %s32, 1
      %s34 = scalar_select %p31, %s32, %s33
      %p37 = pneg %p31
      %p38 = scmp.eq.s32.totalorder %s22, 2
      %p39 = por %p37, %p38
      %p40 = scmp.ne.s32.totalorder %s32, %s35
      %p41 = scmp.eq.s32.totalorder %s22, 0
      %p42 = por %p40, %p41
      %p43 = scmp.ne.s32.totalorder %s32, %s35
      %p44 = scmp.eq.s32.totalorder %s27, 2
      %p45 = por %p43, %p44
      %p46 = scmp.ne.s32.totalorder %s35, %s36
      %p47 = scmp.eq.s32.totalorder %s27, 0
      %p48 = por %p46, %p47
      %p49 = scmp.ne.s32.totalorder %s35, %s36
      %p50 = scmp.eq.s32.totalorder %s28, 2
      %p51 = por %p49, %p50
      %p53 = scmp.ne.s32.totalorder %s36, %s52
      %p54 = scmp.eq.s32.totalorder %s28, 0
      %p55 = por %p53, %p54
      %p56 = scmp.lt.s32.totalorder %s22, 3
      %s57 = scalar_select %p56, %s22, 3
      %p58 = scmp.lt.s32.totalorder %s29, 3
      %s59 = scalar_select %p58, %s29, 3
      %s60 = ssub.s32 %s22, %s29
      %s61 = ssub.s32 %s57, %s59
      %s62 = sor.u32 %s60, %s61
      %p63 = scmp.eq.s32.totalorder %s62, 0
      %s65 = sadd.s32 %s64, 1
      %s66 = scalar_select %p63, %s64, %s65
      %p69 = pneg %p63
      %p70 = scmp.eq.s32.totalorder %s22, 2
      %p71 = por %p69, %p70
      %p72 = scmp.ne.s32.totalorder %s64, %s67
      %p73 = scmp.eq.s32.totalorder %s22, 0
      %p74 = por %p72, %p73
      %p75 = scmp.ne.s32.totalorder %s64, %s67
      %p76 = scmp.eq.s32.totalorder %s27, 2
      %p77 = por %p75, %p76
      %p78 = scmp.ne.s32.totalorder %s67, %s68
      %p79 = scmp.eq.s32.totalorder %s27, 0
      %p80 = por %p78, %p79
      %p81 = scmp.ne.s32.totalorder %s67, %s68
      %p82 = scmp.eq.s32.totalorder %s28, 2
      %p83 = por %p81, %p82
      %p85 = scmp.ne.s32.totalorder %s68, %s84
      %p86 = scmp.eq.s32.totalorder %s28, 0
      %p87 = por %p85, %p86
      %s88 = ssub.s32 %s22, %s29
      %p89 = scmp.eq.s32.totalorder %s88, 0
      %s91 = sadd.s32 %s90, 1
      %s92 = scalar_select %p89, %s90, %s91
      %p95 = pneg %p89
      %p96 = scmp.eq.s32.totalorder %s22, 2
      %p97 = por %p95, %p96
      %p98 = scmp.ne.s32.totalorder %s90, %s93
      %p99 = scmp.eq.s32.totalorder %s22, 0
      %p100 = por %p98, %p99
      %p101 = scmp.ne.s32.totalorder %s90, %s93
      %p102 = scmp.eq.s32.totalorder %s27, 2
      %p103 = por %p101, %p102
      %p104 = scmp.ne.s32.totalorder %s93, %s94
      %p105 = scmp.eq.s32.totalorder %s27, 0
      %p106 = por %p104, %p105
      %p107 = scmp.ne.s32.totalorder %s93, %s94
      %p108 = scmp.eq.s32.totalorder %s28, 2
      %p109 = por %p107, %p108
      %p111 = scmp.ne.s32.totalorder %s94, %s110
      %p112 = scmp.eq.s32.totalorder %s28, 0
      %p113 = por %p111, %p112
      %s114 = ssub.s32 %s22, %s29
      %p115 = scmp.eq.s32.totalorder %s114, 0
      %s117 = sadd.s32 %s116, 1
      %s118 = scalar_select %p115, %s116, %s117
      %p121 = pneg %p115
      %p122 = scmp.eq.s32.totalorder %s22, 2
      %p123 = por %p121, %p122
      %p124 = scmp.ne.s32.totalorder %s116, %s119
      %p125 = scmp.eq.s32.totalorder %s22, 0
      %p126 = por %p124, %p125
      %p127 = scmp.ne.s32.totalorder %s116, %s119
      %p128 = scmp.eq.s32.totalorder %s27, 2
      %p129 = por %p127, %p128
      %p130 = scmp.ne.s32.totalorder %s119, %s120
      %p131 = scmp.eq.s32.totalorder %s27, 0
      %p132 = por %p130, %p131
      %p133 = scmp.ne.s32.totalorder %s119, %s120
      %p134 = scmp.eq.s32.totalorder %s28, 2
      %p135 = por %p133, %p134
      %p137 = scmp.ne.s32.totalorder %s120, %s136
      %p138 = scmp.eq.s32.totalorder %s28, 0
      %p139 = por %p137, %p138
      %p140 = scmp.le.s32.totalorder 1, %s22
      %p141 = scmp.lt.s32.totalorder %s22, 4
      %p142 = pnand %p140, %p141
      %p143 = pneg %p142
      // Predicated region
      $region9: #{tpu_custom_call.1} parent=5 // pred_check
        _
      $region10: #{tpu_custom_call.1} parent=5 // pred_check_branch
        %145 = sbr.rel (%p142) target = $region12
      $region11: #{tpu_custom_call.1} parent=5 // pred_region
        %s146 = ssub.s32 %s22, 1
      $region12: #{tpu_custom_call.1} parent=5 // pred_fallthru
        _
      %p147 = scmp.lt.s32.totalorder %s22, 3
      // Predicated region
      $region13: #{tpu_custom_call.1} parent=5 // pred_check
        %p148 = pneg %p147
      $region14: #{tpu_custom_call.1} parent=5 // pred_check_branch
        %150 = sbr.rel (%p148) target = $region16
      $region15: #{tpu_custom_call.1} parent=5 // pred_region
        // Predicated region
        $region17: #{tpu_custom_call.1} parent=15 // pred_check
          %p151 = pneg %p42
        $region18: #{tpu_custom_call.1} parent=15 // pred_check_branch
          %153 = sbr.rel (%p151) target = $region20
        $region19: #{tpu_custom_call.1} parent=15 // pred_region
          %s154 = sand.u32 %s32, 1
          %s155 = scalar_lea.sflag [#allocation3], %s154
          %s156 = sand.u32 %s32, 1
          %s157 = smul.addr %s156, 512
          %s158 = scalar_lea.vmem [#allocation2], %s157
          %s159 = smul.u32 16, %s22
          %s160 = ssub.s32 40, %s159
          %p161 = scmp.lt.s32.totalorder %s160, 16
          %s162 = scalar_select %p161, %s160, 16
          %s163 = smul.u32 128, %s162
          %s164 = smul.u32 %s163, 4
          %s166 = ssub.s32 8192, %s164
          %167 = vsyncadd %s155, %s166
          %p168 = scmp.ne.s32.totalorder 0, %s164
          %s169 = smul.addr %s159, 4
          %s170 = smul.addr %s169, 128
          %s171 = scalar_lea.hbm %s0, %s170
          %s172 = smul.u32 32, %s162
          %s173 = sshll.u32 %s158, 4
          %s174 = int_to_ptr.vmem [resolvable:$true] %s173
          %s175 = sshll.u32 %s172, 4
          %179 = dma.hbm_to_vmem [thread:$0]  (%p168), %s171, %s175, %s174, %s155, 512, 512, 32
        $region20: #{tpu_custom_call.1} parent=15 // pred_fallthru
          _
        // Predicated region
        $region21: #{tpu_custom_call.1} parent=15 // pred_check
          %p180 = pneg %p74
        $region22: #{tpu_custom_call.1} parent=15 // pred_check_branch
          %182 = sbr.rel (%p180) target = $region24
        $region23: #{tpu_custom_call.1} parent=15 // pred_region
          %s183 = sand.u32 %s64, 1
          %s184 = scalar_lea.sflag [#allocation6], %s183
          %s185 = sand.u32 %s64, 1
          %s186 = smul.addr %s185, 128
          %s187 = scalar_lea.vmem [#allocation5], %s186
          %p188 = scmp.lt.s32.totalorder %s22, 3
          %s189 = scalar_select %p188, %s22, 3
          %s190 = smul.u32 16, %s22
          %s191 = ssub.s32 40, %s190
          %p192 = scmp.lt.s32.totalorder %s191, 16
          %s193 = scalar_select %p192, %s191, 16
          %s194 = smul.u32 128, %s193
          %s196 = ssub.s32 2048, %s194
          %197 = vsyncadd %s184, %s196
          %p198 = scmp.ne.s32.totalorder 0, %s194
          %s199 = smul.addr %s190, 4
          %s200 = sadd.s32 %s189, %s199
          %s201 = smul.addr %s200, 128
          %s202 = scalar_lea.hbm %s1, %s201
          %s203 = smul.u32 8, %s193
          %s204 = sshll.u32 %s187, 4
          %s205 = int_to_ptr.vmem [resolvable:$true] %s204
          %s206 = sshll.u32 %s203, 4
          %210 = dma.hbm_to_vmem [thread:$0]  (%p198), %s202, %s206, %s205, %s184, 512, 128, 8
        $region24: #{tpu_custom_call.1} parent=15 // pred_fallthru
          _
      $region16: #{tpu_custom_call.1} parent=5 // pred_fallthru
        _
      %p211 = scmp.le.s32.totalorder 1, %s22
      %p212 = scmp.lt.s32.totalorder %s22, 4
      %p213 = pnand %p211, %p212
      %p214 = pneg %p213
      // Predicated region
      $region25: #{tpu_custom_call.1} parent=5 // pred_check
        _
      $region26: #{tpu_custom_call.1} parent=5 // pred_check_branch
        %216 = sbr.rel (%p213) target = $region28
      $region27: #{tpu_custom_call.1} parent=5 // pred_region
        %s217 = ssub.s32 %s22, 1
        %s218 = sand.u32 %s35, 1
        %s219 = scalar_lea.sflag [#allocation3], %s218
        %s220 = sand.u32 %s35, 1
        %s221 = smul.addr %s220, 512
        %s222 = scalar_lea.vmem [#allocation2], %s221
        // Predicated region
        $region29: #{tpu_custom_call.1} parent=27 // pred_check
          %p223 = pneg %p48
        $region30: #{tpu_custom_call.1} parent=27 // pred_check_branch
          %225 = sbr.rel (%p223) target = $region32
        $region31: #{tpu_custom_call.1} parent=27 // pred_region
          %226 = dma.done %s219, 8192
        $region32: #{tpu_custom_call.1} parent=27 // pred_fallthru
          _
        %s227 = sand.u32 %s67, 1
        %s228 = scalar_lea.sflag [#allocation6], %s227
        %s229 = sand.u32 %s67, 1
        %s230 = smul.addr %s229, 128
        %s231 = scalar_lea.vmem [#allocation5], %s230
        // Predicated region
        $region33: #{tpu_custom_call.1} parent=27 // pred_check
          %p232 = pneg %p80
        $region34: #{tpu_custom_call.1} parent=27 // pred_check_branch
          %234 = sbr.rel (%p232) target = $region36
        $region35: #{tpu_custom_call.1} parent=27 // pred_region
          %235 = dma.done %s228, 2048
        $region36: #{tpu_custom_call.1} parent=27 // pred_fallthru
          _
        %s236 = sand.u32 %s35, 1
        %s237 = scalar_lea.sflag [#allocation3], %s236
        %s238 = sand.u32 %s35, 1
        %s239 = smul.addr %s238, 512
        %s240 = scalar_lea.vmem [#allocation2], %s239
        %p241 = pneg %p48
        %p242 = pneg %p45
        %s243 = sand.u32 %s67, 1
        %s244 = scalar_lea.sflag [#allocation6], %s243
        %s245 = sand.u32 %s67, 1
        %s246 = smul.addr %s245, 128
        %s247 = scalar_lea.vmem [#allocation5], %s246
        %p248 = pneg %p80
        %p249 = pneg %p77
        %p250 = pneg %p106
        %p251 = pneg %p103
        %s252 = sand.u32 %s93, 1
        %s253 = scalar_lea.sflag [#allocation4], %s252
        %s254 = sand.u32 %s93, 1
        %s255 = smul.addr %s254, 8
        %s256 = scalar_lea.vmem [#allocation7], %s255
        %p257 = pneg %p132
        %p258 = pneg %p129
        %s259 = sand.u32 %s119, 1
        %s260 = scalar_lea.sflag [#allocation9], %s259
        %s261 = sand.u32 %s119, 1
        %s262 = scalar_lea.vmem [#allocation8], %s261
        %s263 = smul.u32 16, %s27
        %s264 = ssub.s32 40, %s263
        %p265 = scmp.lt.s32.totalorder %s264, 16
        %s266 = scalar_select %p265, %s264, 16
        %s267 = smul.u32 128, %s266
        %s268 = smul.u32 %s267, 4
        %p269 = scmp.lt.s32.totalorder %s27, 3
        %s270 = scalar_select %p269, %s27, 3
        %s271 = smul.u32 16, %s27
        %s272 = ssub.s32 40, %s271
        %p273 = scmp.lt.s32.totalorder %s272, 16
        %s274 = scalar_select %p273, %s272, 16
        %s275 = smul.u32 128, %s274
        %s276 = smul.u32 %s27, 128
        %v277 = vld [vmem:[%s222] sm:$0xff]
        %v278 = vld [vmem:[%s222 + $0x8] sm:$0xff]
        %v279 = vld [vmem:[%s222 + $0x10] sm:$0xff]
        %v280 = vld [vmem:[%s222 + $0x18] sm:$0xff]
        %v281 = vld [vmem:[%s222 + $0x20] sm:$0xff]
        %v282 = vld [vmem:[%s222 + $0x28] sm:$0xff]
        %v283 = vld [vmem:[%s222 + $0x30] sm:$0xff]
        %v284 = vld [vmem:[%s222 + $0x38] sm:$0xff]
        %v285 = vld [vmem:[%s222 + $0x40] sm:$0xff]
        %v286 = vld [vmem:[%s222 + $0x48] sm:$0xff]
        %v287 = vld [vmem:[%s222 + $0x50] sm:$0xff]
        %v288 = vld [vmem:[%s222 + $0x58] sm:$0xff]
        %v289 = vld [vmem:[%s222 + $0x60] sm:$0xff]
        %v290 = vld [vmem:[%s222 + $0x68] sm:$0xff]
        %v291 = vld [vmem:[%s222 + $0x70] sm:$0xff]
        %v292 = vld [vmem:[%s222 + $0x78] sm:$0xff]
        %v293 = vld [vmem:[%s222 + $0x80] sm:$0xff]
        %v294 = vld [vmem:[%s222 + $0x88] sm:$0xff]
        %v295 = vld [vmem:[%s222 + $0x90] sm:$0xff]
        %v296 = vld [vmem:[%s222 + $0x98] sm:$0xff]
        %v297 = vld [vmem:[%s222 + $0xa0] sm:$0xff]
        %v298 = vld [vmem:[%s222 + $0xa8] sm:$0xff]
        %v299 = vld [vmem:[%s222 + $0xb0] sm:$0xff]
        %v300 = vld [vmem:[%s222 + $0xb8] sm:$0xff]
        %v301 = vld [vmem:[%s222 + $0xc0] sm:$0xff]
        %v302 = vld [vmem:[%s222 + $0xc8] sm:$0xff]
        %v303 = vld [vmem:[%s222 + $0xd0] sm:$0xff]
        %v304 = vld [vmem:[%s222 + $0xd8] sm:$0xff]
        %v305 = vld [vmem:[%s222 + $0xe0] sm:$0xff]
        %v306 = vld [vmem:[%s222 + $0xe8] sm:$0xff]
        %v307 = vld [vmem:[%s222 + $0xf0] sm:$0xff]
        %v308 = vld [vmem:[%s222 + $0xf8] sm:$0xff]
        %v309 = vld [vmem:[%s222 + $0x100] sm:$0xff]
        %v310 = vld [vmem:[%s222 + $0x108] sm:$0xff]
        %v311 = vld [vmem:[%s222 + $0x110] sm:$0xff]
        %v312 = vld [vmem:[%s222 + $0x118] sm:$0xff]
        %v313 = vld [vmem:[%s222 + $0x120] sm:$0xff]
        %v314 = vld [vmem:[%s222 + $0x128] sm:$0xff]
        %v315 = vld [vmem:[%s222 + $0x130] sm:$0xff]
        %v316 = vld [vmem:[%s222 + $0x138] sm:$0xff]
        %v317 = vld [vmem:[%s222 + $0x140] sm:$0xff]
        %v318 = vld [vmem:[%s222 + $0x148] sm:$0xff]
        %v319 = vld [vmem:[%s222 + $0x150] sm:$0xff]
        %v320 = vld [vmem:[%s222 + $0x158] sm:$0xff]
        %v321 = vld [vmem:[%s222 + $0x160] sm:$0xff]
        %v322 = vld [vmem:[%s222 + $0x168] sm:$0xff]
        %v323 = vld [vmem:[%s222 + $0x170] sm:$0xff]
        %v324 = vld [vmem:[%s222 + $0x178] sm:$0xff]
        %v325 = vld [vmem:[%s222 + $0x180] sm:$0xff]
        %v326 = vld [vmem:[%s222 + $0x188] sm:$0xff]
        %v327 = vld [vmem:[%s222 + $0x190] sm:$0xff]
        %v328 = vld [vmem:[%s222 + $0x198] sm:$0xff]
        %v329 = vld [vmem:[%s222 + $0x1a0] sm:$0xff]
        %v330 = vld [vmem:[%s222 + $0x1a8] sm:$0xff]
        %v331 = vld [vmem:[%s222 + $0x1b0] sm:$0xff]
        %v332 = vld [vmem:[%s222 + $0x1b8] sm:$0xff]
        %v333 = vld [vmem:[%s222 + $0x1c0] sm:$0xff]
        %v334 = vld [vmem:[%s222 + $0x1c8] sm:$0xff]
        %v335 = vld [vmem:[%s222 + $0x1d0] sm:$0xff]
        %v336 = vld [vmem:[%s222 + $0x1d8] sm:$0xff]
        %v337 = vld [vmem:[%s222 + $0x1e0] sm:$0xff]
        %v338 = vld [vmem:[%s222 + $0x1e8] sm:$0xff]
        %v339 = vld [vmem:[%s222 + $0x1f0] sm:$0xff]
        %v340 = vld [vmem:[%s222 + $0x1f8] sm:$0xff]
        %v341 = vmul.f32 %v277, 20.0
        %v342 = vmul.f32 %v278, 20.0
        %v343 = vmul.f32 %v279, 20.0
        %v344 = vmul.f32 %v280, 20.0
        %v345 = vmul.f32 %v281, 20.0
        %v346 = vmul.f32 %v282, 20.0
        %v347 = vmul.f32 %v283, 20.0
        %v348 = vmul.f32 %v284, 20.0
        %v349 = vmul.f32 %v285, 20.0
        %v350 = vmul.f32 %v286, 20.0
        %v351 = vmul.f32 %v287, 20.0
        %v352 = vmul.f32 %v288, 20.0
        %v353 = vmul.f32 %v289, 20.0
        %v354 = vmul.f32 %v290, 20.0
        %v355 = vmul.f32 %v291, 20.0
        %v356 = vmul.f32 %v292, 20.0
        %v357 = vmul.f32 %v293, 20.0
        %v358 = vmul.f32 %v294, 20.0
        %v359 = vmul.f32 %v295, 20.0
        %v360 = vmul.f32 %v296, 20.0
        %v361 = vmul.f32 %v297, 20.0
        %v362 = vmul.f32 %v298, 20.0
        %v363 = vmul.f32 %v299, 20.0
        %v364 = vmul.f32 %v300, 20.0
        %v365 = vmul.f32 %v301, 20.0
        %v366 = vmul.f32 %v302, 20.0
        %v367 = vmul.f32 %v303, 20.0
        %v368 = vmul.f32 %v304, 20.0
        %v369 = vmul.f32 %v305, 20.0
        %v370 = vmul.f32 %v306, 20.0
        %v371 = vmul.f32 %v307, 20.0
        %v372 = vmul.f32 %v308, 20.0
        %v373 = vmul.f32 %v309, 20.0
        %v374 = vmul.f32 %v310, 20.0
        %v375 = vmul.f32 %v311, 20.0
        %v376 = vmul.f32 %v312, 20.0
        %v377 = vmul.f32 %v313, 20.0
        %v378 = vmul.f32 %v314, 20.0
        %v379 = vmul.f32 %v315, 20.0
        %v380 = vmul.f32 %v316, 20.0
        %v381 = vmul.f32 %v317, 20.0
        %v382 = vmul.f32 %v318, 20.0
        %v383 = vmul.f32 %v319, 20.0
        %v384 = vmul.f32 %v320, 20.0
        %v385 = vmul.f32 %v321, 20.0
        %v386 = vmul.f32 %v322, 20.0
        %v387 = vmul.f32 %v323, 20.0
        %v388 = vmul.f32 %v324, 20.0
        %v389 = vmul.f32 %v325, 20.0
        %v390 = vmul.f32 %v326, 20.0
        %v391 = vmul.f32 %v327, 20.0
        %v392 = vmul.f32 %v328, 20.0
        %v393 = vmul.f32 %v329, 20.0
        %v394 = vmul.f32 %v330, 20.0
        %v395 = vmul.f32 %v331, 20.0
        %v396 = vmul.f32 %v332, 20.0
        %v397 = vmul.f32 %v333, 20.0
        %v398 = vmul.f32 %v334, 20.0
        %v399 = vmul.f32 %v335, 20.0
        %v400 = vmul.f32 %v336, 20.0
        %v401 = vmul.f32 %v337, 20.0
        %v402 = vmul.f32 %v338, 20.0
        %v403 = vmul.f32 %v339, 20.0
        %v404 = vmul.f32 %v340, 20.0
        %s405 = sadd.s32 %s276, 128
        %p406 = scmp.gt.s32.totalorder %s405, 320
        %p407 = scmp.le.s32.totalorder %s405, 320
        // Predicated region
        $region37: #{tpu_custom_call.1} parent=27 // pred_check
          %p408 = pneg %p407
        $region38: #{tpu_custom_call.1} parent=27 // pred_check_branch
          %410 = sbr.rel (%p408) target = $region40
        $region39: #{tpu_custom_call.1} parent=27 // pred_region
          %v411 = vmax.f32 %v341, %v345
          %v412 = vmax.f32 %v411, %v349
          %v413 = vmax.f32 %v412, %v353
          %v414 = vmax.f32 %v413, %v357
          %v415 = vmax.f32 %v414, %v361
          %v416 = vmax.f32 %v415, %v365
          %v417 = vmax.f32 %v416, %v369
          %v418 = vmax.f32 %v417, %v373
          %v419 = vmax.f32 %v418, %v377
          %v420 = vmax.f32 %v419, %v381
          %v421 = vmax.f32 %v420, %v385
          %v422 = vmax.f32 %v421, %v389
          %v423 = vmax.f32 %v422, %v393
          %v424 = vmax.f32 %v423, %v397
          %v425 = vmax.f32 %v424, %v401
          %v426 = vrot.slane %v425, 4
          %v427 = vmax.f32 %v425, %v426
          %v428 = vrot.slane %v427, 2
          %v429 = vmax.f32 %v427, %v428
          %v430 = vrot.slane %v429, 1
          %v431 = vmax.f32 %v429, %v430
          %v432 = vmax.f32 %v342, %v346
          %v433 = vmax.f32 %v432, %v350
          %v434 = vmax.f32 %v433, %v354
          %v435 = vmax.f32 %v434, %v358
          %v436 = vmax.f32 %v435, %v362
          %v437 = vmax.f32 %v436, %v366
          %v438 = vmax.f32 %v437, %v370
          %v439 = vmax.f32 %v438, %v374
          %v440 = vmax.f32 %v439, %v378
          %v441 = vmax.f32 %v440, %v382
          %v442 = vmax.f32 %v441, %v386
          %v443 = vmax.f32 %v442, %v390
          %v444 = vmax.f32 %v443, %v394
          %v445 = vmax.f32 %v444, %v398
          %v446 = vmax.f32 %v445, %v402
          %v447 = vrot.slane %v446, 4
          %v448 = vmax.f32 %v446, %v447
          %v449 = vrot.slane %v448, 2
          %v450 = vmax.f32 %v448, %v449
          %v451 = vrot.slane %v450, 1
          %v452 = vmax.f32 %v450, %v451
          %v453 = vmax.f32 %v343, %v347
          %v454 = vmax.f32 %v453, %v351
          %v455 = vmax.f32 %v454, %v355
          %v456 = vmax.f32 %v455, %v359
          %v457 = vmax.f32 %v456, %v363
          %v458 = vmax.f32 %v457, %v367
          %v459 = vmax.f32 %v458, %v371
          %v460 = vmax.f32 %v459, %v375
          %v461 = vmax.f32 %v460, %v379
          %v462 = vmax.f32 %v461, %v383
          %v463 = vmax.f32 %v462, %v387
          %v464 = vmax.f32 %v463, %v391
          %v465 = vmax.f32 %v464, %v395
          %v466 = vmax.f32 %v465, %v399
          %v467 = vmax.f32 %v466, %v403
          %v468 = vrot.slane %v467, 4
          %v469 = vmax.f32 %v467, %v468
          %v470 = vrot.slane %v469, 2
          %v471 = vmax.f32 %v469, %v470
          %v472 = vrot.slane %v471, 1
          %v473 = vmax.f32 %v471, %v472
          %v474 = vmax.f32 %v344, %v348
          %v475 = vmax.f32 %v474, %v352
          %v476 = vmax.f32 %v475, %v356
          %v477 = vmax.f32 %v476, %v360
          %v478 = vmax.f32 %v477, %v364
          %v479 = vmax.f32 %v478, %v368
          %v480 = vmax.f32 %v479, %v372
          %v481 = vmax.f32 %v480, %v376
          %v482 = vmax.f32 %v481, %v380
          %v483 = vmax.f32 %v482, %v384
          %v484 = vmax.f32 %v483, %v388
          %v485 = vmax.f32 %v484, %v392
          %v486 = vmax.f32 %v485, %v396
          %v487 = vmax.f32 %v486, %v400
          %v488 = vmax.f32 %v487, %v404
          %v489 = vrot.slane %v488, 4
          %v490 = vmax.f32 %v488, %v489
          %v491 = vrot.slane %v490, 2
          %v492 = vmax.f32 %v490, %v491
          %v493 = vrot.slane %v492, 1
          %v494 = vmax.f32 %v492, %v493
          %v495 = vsub.f32 %v341, %v431
          %v496 = vsub.f32 %v342, %v452
          %v497 = vsub.f32 %v343, %v473
          %v498 = vsub.f32 %v344, %v494
          %v499 = vsub.f32 %v345, %v431
          %v500 = vsub.f32 %v346, %v452
          %v501 = vsub.f32 %v347, %v473
          %v502 = vsub.f32 %v348, %v494
          %v503 = vsub.f32 %v349, %v431
          %v504 = vsub.f32 %v350, %v452
          %v505 = vsub.f32 %v351, %v473
          %v506 = vsub.f32 %v352, %v494
          %v507 = vsub.f32 %v353, %v431
          %v508 = vsub.f32 %v354, %v452
          %v509 = vsub.f32 %v355, %v473
          %v510 = vsub.f32 %v356, %v494
          %v511 = vsub.f32 %v357, %v431
          %v512 = vsub.f32 %v358, %v452
          %v513 = vsub.f32 %v359, %v473
          %v514 = vsub.f32 %v360, %v494
          %v515 = vsub.f32 %v361, %v431
          %v516 = vsub.f32 %v362, %v452
          %v517 = vsub.f32 %v363, %v473
          %v518 = vsub.f32 %v364, %v494
          %v519 = vsub.f32 %v365, %v431
          %v520 = vsub.f32 %v366, %v452
          %v521 = vsub.f32 %v367, %v473
          %v522 = vsub.f32 %v368, %v494
          %v523 = vsub.f32 %v369, %v431
          %v524 = vsub.f32 %v370, %v452
          %v525 = vsub.f32 %v371, %v473
          %v526 = vsub.f32 %v372, %v494
          %v527 = vsub.f32 %v373, %v431
          %v528 = vsub.f32 %v374, %v452
          %v529 = vsub.f32 %v375, %v473
          %v530 = vsub.f32 %v376, %v494
          %v531 = vsub.f32 %v377, %v431
          %v532 = vsub.f32 %v378, %v452
          %v533 = vsub.f32 %v379, %v473
          %v534 = vsub.f32 %v380, %v494
          %v535 = vsub.f32 %v381, %v431
          %v536 = vsub.f32 %v382, %v452
          %v537 = vsub.f32 %v383, %v473
          %v538 = vsub.f32 %v384, %v494
          %v539 = vsub.f32 %v385, %v431
          %v540 = vsub.f32 %v386, %v452
          %v541 = vsub.f32 %v387, %v473
          %v542 = vsub.f32 %v388, %v494
          %v543 = vsub.f32 %v389, %v431
          %v544 = vsub.f32 %v390, %v452
          %v545 = vsub.f32 %v391, %v473
          %v546 = vsub.f32 %v392, %v494
          %v547 = vsub.f32 %v393, %v431
          %v548 = vsub.f32 %v394, %v452
          %v549 = vsub.f32 %v395, %v473
          %v550 = vsub.f32 %v396, %v494
          %v551 = vsub.f32 %v397, %v431
          %v552 = vsub.f32 %v398, %v452
          %v553 = vsub.f32 %v399, %v473
          %v554 = vsub.f32 %v400, %v494
          %v555 = vsub.f32 %v401, %v431
          %v556 = vsub.f32 %v402, %v452
          %v557 = vsub.f32 %v403, %v473
          %v558 = vsub.f32 %v404, %v494
          %v559 = vmul.f32 %v495, 1.442695
          %v560 = vpow.pop %v559
          %v561 = vmul.f32 %v496, 1.442695
          %v562 = vpow.pop %v561
          %v563 = vmul.f32 %v497, 1.442695
          %v564 = vpow.pop %v563
          %v565 = vmul.f32 %v498, 1.442695
          %v566 = vpow.pop %v565
          %v567 = vmul.f32 %v499, 1.442695
          %v568 = vpow.pop %v567
          %v569 = vmul.f32 %v500, 1.442695
          %v570 = vpow.pop %v569
          %v571 = vmul.f32 %v501, 1.442695
          %v572 = vpow.pop %v571
          %v573 = vmul.f32 %v502, 1.442695
          %v574 = vpow.pop %v573
          %v575 = vmul.f32 %v503, 1.442695
          %v576 = vpow.pop %v575
          %v577 = vmul.f32 %v504, 1.442695
          %v578 = vpow.pop %v577
          %v579 = vmul.f32 %v505, 1.442695
          %v580 = vpow.pop %v579
          %v581 = vmul.f32 %v506, 1.442695
          %v582 = vpow.pop %v581
          %v583 = vmul.f32 %v507, 1.442695
          %v584 = vpow.pop %v583
          %v585 = vmul.f32 %v508, 1.442695
          %v586 = vpow.pop %v585
          %v587 = vmul.f32 %v509, 1.442695
          %v588 = vpow.pop %v587
          %v589 = vmul.f32 %v510, 1.442695
          %v590 = vpow.pop %v589
          %v591 = vmul.f32 %v511, 1.442695
          %v592 = vpow.pop %v591
          %v593 = vmul.f32 %v512, 1.442695
          %v594 = vpow.pop %v593
          %v595 = vmul.f32 %v513, 1.442695
          %v596 = vpow.pop %v595
          %v597 = vmul.f32 %v514, 1.442695
          %v598 = vpow.pop %v597
          %v599 = vmul.f32 %v515, 1.442695
          %v600 = vpow.pop %v599
          %v601 = vmul.f32 %v516, 1.442695
          %v602 = vpow.pop %v601
          %v603 = vmul.f32 %v517, 1.442695
          %v604 = vpow.pop %v603
          %v605 = vmul.f32 %v518, 1.442695
          %v606 = vpow.pop %v605
          %v607 = vmul.f32 %v519, 1.442695
          %v608 = vpow.pop %v607
          %v609 = vmul.f32 %v520, 1.442695
          %v610 = vpow.pop %v609
          %v611 = vmul.f32 %v521, 1.442695
          %v612 = vpow.pop %v611
          %v613 = vmul.f32 %v522, 1.442695
          %v614 = vpow.pop %v613
          %v615 = vmul.f32 %v523, 1.442695
          %v616 = vpow.pop %v615
          %v617 = vmul.f32 %v524, 1.442695
          %v618 = vpow.pop %v617
          %v619 = vmul.f32 %v525, 1.442695
          %v620 = vpow.pop %v619
          %v621 = vmul.f32 %v526, 1.442695
          %v622 = vpow.pop %v621
          %v623 = vmul.f32 %v527, 1.442695
          %v624 = vpow.pop %v623
          %v625 = vmul.f32 %v528, 1.442695
          %v626 = vpow.pop %v625
          %v627 = vmul.f32 %v529, 1.442695
          %v628 = vpow.pop %v627
          %v629 = vmul.f32 %v530, 1.442695
          %v630 = vpow.pop %v629
          %v631 = vmul.f32 %v531, 1.442695
          %v632 = vpow.pop %v631
          %v633 = vmul.f32 %v532, 1.442695
          %v634 = vpow.pop %v633
          %v635 = vmul.f32 %v533, 1.442695
          %v636 = vpow.pop %v635
          %v637 = vmul.f32 %v534, 1.442695
          %v638 = vpow.pop %v637
          %v639 = vmul.f32 %v535, 1.442695
          %v640 = vpow.pop %v639
          %v641 = vmul.f32 %v536, 1.442695
          %v642 = vpow.pop %v641
          %v643 = vmul.f32 %v537, 1.442695
          %v644 = vpow.pop %v643
          %v645 = vmul.f32 %v538, 1.442695
          %v646 = vpow.pop %v645
          %v647 = vmul.f32 %v539, 1.442695
          %v648 = vpow.pop %v647
          %v649 = vmul.f32 %v540, 1.442695
          %v650 = vpow.pop %v649
          %v651 = vmul.f32 %v541, 1.442695
          %v652 = vpow.pop %v651
          %v653 = vmul.f32 %v542, 1.442695
          %v654 = vpow.pop %v653
          %v655 = vmul.f32 %v543, 1.442695
          %v656 = vpow.pop %v655
          %v657 = vmul.f32 %v544, 1.442695
          %v658 = vpow.pop %v657
          %v659 = vmul.f32 %v545, 1.442695
          %v660 = vpow.pop %v659
          %v661 = vmul.f32 %v546, 1.442695
          %v662 = vpow.pop %v661
          %v663 = vmul.f32 %v547, 1.442695
          %v664 = vpow.pop %v663
          %v665 = vmul.f32 %v548, 1.442695
          %v666 = vpow.pop %v665
          %v667 = vmul.f32 %v549, 1.442695
          %v668 = vpow.pop %v667
          %v669 = vmul.f32 %v550, 1.442695
          %v670 = vpow.pop %v669
          %v671 = vmul.f32 %v551, 1.442695
          %v672 = vpow.pop %v671
          %v673 = vmul.f32 %v552, 1.442695
          %v674 = vpow.pop %v673
          %v675 = vmul.f32 %v553, 1.442695
          %v676 = vpow.pop %v675
          %v677 = vmul.f32 %v554, 1.442695
          %v678 = vpow.pop %v677
          %v679 = vmul.f32 %v555, 1.442695
          %v680 = vpow.pop %v679
          %v681 = vmul.f32 %v556, 1.442695
          %v682 = vpow.pop %v681
          %v683 = vmul.f32 %v557, 1.442695
          %v684 = vpow.pop %v683
          %v685 = vmul.f32 %v558, 1.442695
          %v686 = vpow.pop %v685
          %v687 = vadd.f32 %v560, %v568
          %v688 = vadd.f32 %v687, %v576
          %v689 = vadd.f32 %v688, %v584
          %v690 = vadd.f32 %v689, %v592
          %v691 = vadd.f32 %v690, %v600
          %v692 = vadd.f32 %v691, %v608
          %v693 = vadd.f32 %v692, %v616
          %v694 = vadd.f32 %v693, %v624
          %v695 = vadd.f32 %v694, %v632
          %v696 = vadd.f32 %v695, %v640
          %v697 = vadd.f32 %v696, %v648
          %v698 = vadd.f32 %v697, %v656
          %v699 = vadd.f32 %v698, %v664
          %v700 = vadd.f32 %v699, %v672
          %v701 = vadd.f32 %v700, %v680
          %v702 = vrot.slane %v701, 4
          %v703 = vadd.f32 %v701, %v702
          %v704 = vrot.slane %v703, 2
          %v705 = vadd.f32 %v703, %v704
          %v706 = vrot.slane %v705, 1
          %v707 = vadd.f32 %v705, %v706
          %v708 = vadd.f32 %v562, %v570
          %v709 = vadd.f32 %v708, %v578
          %v710 = vadd.f32 %v709, %v586
          %v711 = vadd.f32 %v710, %v594
          %v712 = vadd.f32 %v711, %v602
          %v713 = vadd.f32 %v712, %v610
          %v714 = vadd.f32 %v713, %v618
          %v715 = vadd.f32 %v714, %v626
          %v716 = vadd.f32 %v715, %v634
          %v717 = vadd.f32 %v716, %v642
          %v718 = vadd.f32 %v717, %v650
          %v719 = vadd.f32 %v718, %v658
          %v720 = vadd.f32 %v719, %v666
          %v721 = vadd.f32 %v720, %v674
          %v722 = vadd.f32 %v721, %v682
          %v723 = vrot.slane %v722, 4
          %v724 = vadd.f32 %v722, %v723
          %v725 = vrot.slane %v724, 2
          %v726 = vadd.f32 %v724, %v725
          %v727 = vrot.slane %v726, 1
          %v728 = vadd.f32 %v726, %v727
          %v729 = vadd.f32 %v564, %v572
          %v730 = vadd.f32 %v729, %v580
          %v731 = vadd.f32 %v730, %v588
          %v732 = vadd.f32 %v731, %v596
          %v733 = vadd.f32 %v732, %v604
          %v734 = vadd.f32 %v733, %v612
          %v735 = vadd.f32 %v734, %v620
          %v736 = vadd.f32 %v735, %v628
          %v737 = vadd.f32 %v736, %v636
          %v738 = vadd.f32 %v737, %v644
          %v739 = vadd.f32 %v738, %v652
          %v740 = vadd.f32 %v739, %v660
          %v741 = vadd.f32 %v740, %v668
          %v742 = vadd.f32 %v741, %v676
          %v743 = vadd.f32 %v742, %v684
          %v744 = vrot.slane %v743, 4
          %v745 = vadd.f32 %v743, %v744
          %v746 = vrot.slane %v745, 2
          %v747 = vadd.f32 %v745, %v746
          %v748 = vrot.slane %v747, 1
          %v749 = vadd.f32 %v747, %v748
          %v750 = vadd.f32 %v566, %v574
          %v751 = vadd.f32 %v750, %v582
          %v752 = vadd.f32 %v751, %v590
          %v753 = vadd.f32 %v752, %v598
          %v754 = vadd.f32 %v753, %v606
          %v755 = vadd.f32 %v754, %v614
          %v756 = vadd.f32 %v755, %v622
          %v757 = vadd.f32 %v756, %v630
          %v758 = vadd.f32 %v757, %v638
          %v759 = vadd.f32 %v758, %v646
          %v760 = vadd.f32 %v759, %v654
          %v761 = vadd.f32 %v760, %v662
          %v762 = vadd.f32 %v761, %v670
          %v763 = vadd.f32 %v762, %v678
          %v764 = vadd.f32 %v763, %v686
          %v765 = vrot.slane %v764, 4
          %v766 = vadd.f32 %v764, %v765
          %v767 = vrot.slane %v766, 2
          %v768 = vadd.f32 %v766, %v767
          %v769 = vrot.slane %v768, 1
          %v770 = vadd.f32 %v768, %v769
          %v775 = vcombine.low %v431, %v452
          %v776 = vcombine.low %v473, %v494
          %v778 = vunpack.c.l.s4 1966171168
          %v779 = vunpack.c.0.s8 %v778
          %v780 = vlaneseq
          %v781 = vshrl.u32 %v780, 7
          %v782 = vsub.s32 %v779, %v781
          %v783 = vrot.slane %v775, %v782
          %v785 = vunpack.c.l.s4 1966171168
          %v786 = vunpack.c.0.s8 %v785
          %v787 = vlaneseq
          %v788 = vshrl.u32 %v787, 7
          %v789 = vsub.s32 %v786, %v788
          %v790 = vrot.slane %v776, %v789
          %v791 = vcombine.low %v783, %v790
          %v793 = vunpack.c.l.s4 1966171168
          %v794 = vunpack.c.0.s8 %v793
          %v795 = vlaneseq
          %v796 = vshrl.u32 %v795, 7
          %v797 = vsub.s32 %v794, %v796
          %v798 = vrot.slane %v791, %v797
          %v800 = vlaneseq
          %vm801 = vcmp.ge.s32.totalorder %v800, 0
          %vm802 = vcmp.lt.s32.totalorder %v800, 512
          %vm803 = vmand %vm801, %vm802
          %804 = vst.msk [vmem:[%s256] ss:$2 sm:$0xf] %vm803, %v798
          %v809 = vcombine.low %v707, %v728
          %v810 = vcombine.low %v749, %v770
          %v812 = vunpack.c.l.s4 1966171168
          %v813 = vunpack.c.0.s8 %v812
          %v814 = vlaneseq
          %v815 = vshrl.u32 %v814, 7
          %v816 = vsub.s32 %v813, %v815
          %v817 = vrot.slane %v809, %v816
          %v819 = vunpack.c.l.s4 1966171168
          %v820 = vunpack.c.0.s8 %v819
          %v821 = vlaneseq
          %v822 = vshrl.u32 %v821, 7
          %v823 = vsub.s32 %v820, %v822
          %v824 = vrot.slane %v810, %v823
          %v825 = vcombine.low %v817, %v824
          %v827 = vunpack.c.l.s4 1966171168
          %v828 = vunpack.c.0.s8 %v827
          %v829 = vlaneseq
          %v830 = vshrl.u32 %v829, 7
          %v831 = vsub.s32 %v828, %v830
          %v832 = vrot.slane %v825, %v831
          %s834 = scalar_lea.vmem %s256, 1 [#allocation7]
          %835 = vst.msk [vmem:[%s834] ss:$2 sm:$0xf] %vm803, %v832
        $region40: #{tpu_custom_call.1} parent=27 // pred_fallthru
          _
        // Predicated region
        $region41: #{tpu_custom_call.1} parent=27 // pred_check
          %p836 = pneg %p406
        $region42: #{tpu_custom_call.1} parent=27 // pred_check_branch
          %838 = sbr.rel (%p836) target = $region44
        $region43: #{tpu_custom_call.1} parent=27 // pred_region
          %v839 = vlaneseq
          %v840 = vshrl.u32 %v839, 7
          %v841 = vadd.s32 %v840, 8
          %v842 = vadd.s32 %v840, 16
          %v843 = vadd.s32 %v840, 24
          %v844 = vadd.s32 %v840, 32
          %v845 = vadd.s32 %v840, 40
          %v846 = vadd.s32 %v840, 48
          %v847 = vadd.s32 %v840, 56
          %v848 = vadd.s32 %v840, 64
          %v849 = vadd.s32 %v840, 72
          %v850 = vadd.s32 %v840, 80
          %v851 = vadd.s32 %v840, 88
          %v852 = vadd.s32 %v840, 96
          %v853 = vadd.s32 %v840, 104
          %v854 = vadd.s32 %v840, 112
          %v855 = vadd.s32 %v840, 120
          %v856 = vstv %s276
          %v857 = vadd.s32 %v840, %v856
          %v858 = vadd.s32 %v841, %v856
          %v859 = vadd.s32 %v842, %v856
          %v860 = vadd.s32 %v843, %v856
          %v861 = vadd.s32 %v844, %v856
          %v862 = vadd.s32 %v845, %v856
          %v863 = vadd.s32 %v846, %v856
          %v864 = vadd.s32 %v847, %v856
          %v865 = vadd.s32 %v848, %v856
          %v866 = vadd.s32 %v849, %v856
          %v867 = vadd.s32 %v850, %v856
          %v868 = vadd.s32 %v851, %v856
          %v869 = vadd.s32 %v852, %v856
          %v870 = vadd.s32 %v853, %v856
          %v871 = vadd.s32 %v854, %v856
          %v872 = vadd.s32 %v855, %v856
          %vm873 = vcmp.lt.s32.totalorder %v857, 320
          %vm874 = vcmp.lt.s32.totalorder %v858, 320
          %vm875 = vcmp.lt.s32.totalorder %v859, 320
          %vm876 = vcmp.lt.s32.totalorder %v860, 320
          %vm877 = vcmp.lt.s32.totalorder %v861, 320
          %vm878 = vcmp.lt.s32.totalorder %v862, 320
          %vm879 = vcmp.lt.s32.totalorder %v863, 320
          %vm880 = vcmp.lt.s32.totalorder %v864, 320
          %vm881 = vcmp.lt.s32.totalorder %v865, 320
          %vm882 = vcmp.lt.s32.totalorder %v866, 320
          %vm883 = vcmp.lt.s32.totalorder %v867, 320
          %vm884 = vcmp.lt.s32.totalorder %v868, 320
          %vm885 = vcmp.lt.s32.totalorder %v869, 320
          %vm886 = vcmp.lt.s32.totalorder %v870, 320
          %vm887 = vcmp.lt.s32.totalorder %v871, 320
          %vm888 = vcmp.lt.s32.totalorder %v872, 320
          %v889 = vsel %vm873, 1, 0
          %v890 = vsel %vm874, 1, 0
          %v891 = vsel %vm875, 1, 0
          %v892 = vsel %vm876, 1, 0
          %v893 = vsel %vm877, 1, 0
          %v894 = vsel %vm878, 1, 0
          %v895 = vsel %vm879, 1, 0
          %v896 = vsel %vm880, 1, 0
          %v897 = vsel %vm881, 1, 0
          %v898 = vsel %vm882, 1, 0
          %v899 = vsel %vm883, 1, 0
          %v900 = vsel %vm884, 1, 0
          %v901 = vsel %vm885, 1, 0
          %v902 = vsel %vm886, 1, 0
          %v903 = vsel %vm887, 1, 0
          %v904 = vsel %vm888, 1, 0
          %vm905 = vcmp.eq.s32.totalorder %v889, 1
          %vm906 = vcmp.eq.s32.totalorder %v890, 1
          %vm907 = vcmp.eq.s32.totalorder %v891, 1
          %vm908 = vcmp.eq.s32.totalorder %v892, 1
          %vm909 = vcmp.eq.s32.totalorder %v893, 1
          %vm910 = vcmp.eq.s32.totalorder %v894, 1
          %vm911 = vcmp.eq.s32.totalorder %v895, 1
          %vm912 = vcmp.eq.s32.totalorder %v896, 1
          %vm913 = vcmp.eq.s32.totalorder %v897, 1
          %vm914 = vcmp.eq.s32.totalorder %v898, 1
          %vm915 = vcmp.eq.s32.totalorder %v899, 1
          %vm916 = vcmp.eq.s32.totalorder %v900, 1
          %vm917 = vcmp.eq.s32.totalorder %v901, 1
          %vm918 = vcmp.eq.s32.totalorder %v902, 1
          %vm919 = vcmp.eq.s32.totalorder %v903, 1
          %vm920 = vcmp.eq.s32.totalorder %v904, 1
          %v921 = vsel %vm905, %v341, -inf
          %v922 = vsel %vm905, %v342, -inf
          %v923 = vsel %vm905, %v343, -inf
          %v924 = vsel %vm905, %v344, -inf
          %v925 = vsel %vm906, %v345, -inf
          %v926 = vsel %vm906, %v346, -inf
          %v927 = vsel %vm906, %v347, -inf
          %v928 = vsel %vm906, %v348, -inf
          %v929 = vsel %vm907, %v349, -inf
          %v930 = vsel %vm907, %v350, -inf
          %v931 = vsel %vm907, %v351, -inf
          %v932 = vsel %vm907, %v352, -inf
          %v933 = vsel %vm908, %v353, -inf
          %v934 = vsel %vm908, %v354, -inf
          %v935 = vsel %vm908, %v355, -inf
          %v936 = vsel %vm908, %v356, -inf
          %v937 = vsel %vm909, %v357, -inf
          %v938 = vsel %vm909, %v358, -inf
          %v939 = vsel %vm909, %v359, -inf
          %v940 = vsel %vm909, %v360, -inf
          %v941 = vsel %vm910, %v361, -inf
          %v942 = vsel %vm910, %v362, -inf
          %v943 = vsel %vm910, %v363, -inf
          %v944 = vsel %vm910, %v364, -inf
          %v945 = vsel %vm911, %v365, -inf
          %v946 = vsel %vm911, %v366, -inf
          %v947 = vsel %vm911, %v367, -inf
          %v948 = vsel %vm911, %v368, -inf
          %v949 = vsel %vm912, %v369, -inf
          %v950 = vsel %vm912, %v370, -inf
          %v951 = vsel %vm912, %v371, -inf
          %v952 = vsel %vm912, %v372, -inf
          %v953 = vsel %vm913, %v373, -inf
          %v954 = vsel %vm913, %v374, -inf
          %v955 = vsel %vm913, %v375, -inf
          %v956 = vsel %vm913, %v376, -inf
          %v957 = vsel %vm914, %v377, -inf
          %v958 = vsel %vm914, %v378, -inf
          %v959 = vsel %vm914, %v379, -inf
          %v960 = vsel %vm914, %v380, -inf
          %v961 = vsel %vm915, %v381, -inf
          %v962 = vsel %vm915, %v382, -inf
          %v963 = vsel %vm915, %v383, -inf
          %v964 = vsel %vm915, %v384, -inf
          %v965 = vsel %vm916, %v385, -inf
          %v966 = vsel %vm916, %v386, -inf
          %v967 = vsel %vm916, %v387, -inf
          %v968 = vsel %vm916, %v388, -inf
          %v969 = vsel %vm917, %v389, -inf
          %v970 = vsel %vm917, %v390, -inf
          %v971 = vsel %vm917, %v391, -inf
          %v972 = vsel %vm917, %v392, -inf
          %v973 = vsel %vm918, %v393, -inf
          %v974 = vsel %vm918, %v394, -inf
          %v975 = vsel %vm918, %v395, -inf
          %v976 = vsel %vm918, %v396, -inf
          %v977 = vsel %vm919, %v397, -inf
          %v978 = vsel %vm919, %v398, -inf
          %v979 = vsel %vm919, %v399, -inf
          %v980 = vsel %vm919, %v400, -inf
          %v981 = vsel %vm920, %v401, -inf
          %v982 = vsel %vm920, %v402, -inf
          %v983 = vsel %vm920, %v403, -inf
          %v984 = vsel %vm920, %v404, -inf
          %v985 = vmax.f32 %v921, %v925
          %v986 = vmax.f32 %v985, %v929
          %v987 = vmax.f32 %v986, %v933
          %v988 = vmax.f32 %v987, %v937
          %v989 = vmax.f32 %v988, %v941
          %v990 = vmax.f32 %v989, %v945
          %v991 = vmax.f32 %v990, %v949
          %v992 = vmax.f32 %v991, %v953
          %v993 = vmax.f32 %v992, %v957
          %v994 = vmax.f32 %v993, %v961
          %v995 = vmax.f32 %v994, %v965
          %v996 = vmax.f32 %v995, %v969
          %v997 = vmax.f32 %v996, %v973
          %v998 = vmax.f32 %v997, %v977
          %v999 = vmax.f32 %v998, %v981
          %v1000 = vrot.slane %v999, 4
          %v1001 = vmax.f32 %v999, %v1000
          %v1002 = vrot.slane %v1001, 2
          %v1003 = vmax.f32 %v1001, %v1002
          %v1004 = vrot.slane %v1003, 1
          %v1005 = vmax.f32 %v1003, %v1004
          %v1006 = vmax.f32 %v922, %v926
          %v1007 = vmax.f32 %v1006, %v930
          %v1008 = vmax.f32 %v1007, %v934
          %v1009 = vmax.f32 %v1008, %v938
          %v1010 = vmax.f32 %v1009, %v942
          %v1011 = vmax.f32 %v1010, %v946
          %v1012 = vmax.f32 %v1011, %v950
          %v1013 = vmax.f32 %v1012, %v954
          %v1014 = vmax.f32 %v1013, %v958
          %v1015 = vmax.f32 %v1014, %v962
          %v1016 = vmax.f32 %v1015, %v966
          %v1017 = vmax.f32 %v1016, %v970
          %v1018 = vmax.f32 %v1017, %v974
          %v1019 = vmax.f32 %v1018, %v978
          %v1020 = vmax.f32 %v1019, %v982
          %v1021 = vrot.slane %v1020, 4
          %v1022 = vmax.f32 %v1020, %v1021
          %v1023 = vrot.slane %v1022, 2
          %v1024 = vmax.f32 %v1022, %v1023
          %v1025 = vrot.slane %v1024, 1
          %v1026 = vmax.f32 %v1024, %v1025
          %v1027 = vmax.f32 %v923, %v927
          %v1028 = vmax.f32 %v1027, %v931
          %v1029 = vmax.f32 %v1028, %v935
          %v1030 = vmax.f32 %v1029, %v939
          %v1031 = vmax.f32 %v1030, %v943
          %v1032 = vmax.f32 %v1031, %v947
          %v1033 = vmax.f32 %v1032, %v951
          %v1034 = vmax.f32 %v1033, %v955
          %v1035 = vmax.f32 %v1034, %v959
          %v1036 = vmax.f32 %v1035, %v963
          %v1037 = vmax.f32 %v1036, %v967
          %v1038 = vmax.f32 %v1037, %v971
          %v1039 = vmax.f32 %v1038, %v975
          %v1040 = vmax.f32 %v1039, %v979
          %v1041 = vmax.f32 %v1040, %v983
          %v1042 = vrot.slane %v1041, 4
          %v1043 = vmax.f32 %v1041, %v1042
          %v1044 = vrot.slane %v1043, 2
          %v1045 = vmax.f32 %v1043, %v1044
          %v1046 = vrot.slane %v1045, 1
          %v1047 = vmax.f32 %v1045, %v1046
          %v1048 = vmax.f32 %v924, %v928
          %v1049 = vmax.f32 %v1048, %v932
          %v1050 = vmax.f32 %v1049, %v936
          %v1051 = vmax.f32 %v1050, %v940
          %v1052 = vmax.f32 %v1051, %v944
          %v1053 = vmax.f32 %v1052, %v948
          %v1054 = vmax.f32 %v1053, %v952
          %v1055 = vmax.f32 %v1054, %v956
          %v1056 = vmax.f32 %v1055, %v960
          %v1057 = vmax.f32 %v1056, %v964
          %v1058 = vmax.f32 %v1057, %v968
          %v1059 = vmax.f32 %v1058, %v972
          %v1060 = vmax.f32 %v1059, %v976
          %v1061 = vmax.f32 %v1060, %v980
          %v1062 = vmax.f32 %v1061, %v984
          %v1063 = vrot.slane %v1062, 4
          %v1064 = vmax.f32 %v1062, %v1063
          %v1065 = vrot.slane %v1064, 2
          %v1066 = vmax.f32 %v1064, %v1065
          %v1067 = vrot.slane %v1066, 1
          %v1068 = vmax.f32 %v1066, %v1067
          %v1069 = vsub.f32 %v921, %v1005
          %v1070 = vsub.f32 %v922, %v1026
          %v1071 = vsub.f32 %v923, %v1047
          %v1072 = vsub.f32 %v924, %v1068
          %v1073 = vsub.f32 %v925, %v1005
          %v1074 = vsub.f32 %v926, %v1026
          %v1075 = vsub.f32 %v927, %v1047
          %v1076 = vsub.f32 %v928, %v1068
          %v1077 = vsub.f32 %v929, %v1005
          %v1078 = vsub.f32 %v930, %v1026
          %v1079 = vsub.f32 %v931, %v1047
          %v1080 = vsub.f32 %v932, %v1068
          %v1081 = vsub.f32 %v933, %v1005
          %v1082 = vsub.f32 %v934, %v1026
          %v1083 = vsub.f32 %v935, %v1047
          %v1084 = vsub.f32 %v936, %v1068
          %v1085 = vsub.f32 %v937, %v1005
          %v1086 = vsub.f32 %v938, %v1026
          %v1087 = vsub.f32 %v939, %v1047
          %v1088 = vsub.f32 %v940, %v1068
          %v1089 = vsub.f32 %v941, %v1005
          %v1090 = vsub.f32 %v942, %v1026
          %v1091 = vsub.f32 %v943, %v1047
          %v1092 = vsub.f32 %v944, %v1068
          %v1093 = vsub.f32 %v945, %v1005
          %v1094 = vsub.f32 %v946, %v1026
          %v1095 = vsub.f32 %v947, %v1047
          %v1096 = vsub.f32 %v948, %v1068
          %v1097 = vsub.f32 %v949, %v1005
          %v1098 = vsub.f32 %v950, %v1026
          %v1099 = vsub.f32 %v951, %v1047
          %v1100 = vsub.f32 %v952, %v1068
          %v1101 = vsub.f32 %v953, %v1005
          %v1102 = vsub.f32 %v954, %v1026
          %v1103 = vsub.f32 %v955, %v1047
          %v1104 = vsub.f32 %v956, %v1068
          %v1105 = vsub.f32 %v957, %v1005
          %v1106 = vsub.f32 %v958, %v1026
          %v1107 = vsub.f32 %v959, %v1047
          %v1108 = vsub.f32 %v960, %v1068
          %v1109 = vsub.f32 %v961, %v1005
          %v1110 = vsub.f32 %v962, %v1026
          %v1111 = vsub.f32 %v963, %v1047
          %v1112 = vsub.f32 %v964, %v1068
          %v1113 = vsub.f32 %v965, %v1005
          %v1114 = vsub.f32 %v966, %v1026
          %v1115 = vsub.f32 %v967, %v1047
          %v1116 = vsub.f32 %v968, %v1068
          %v1117 = vsub.f32 %v969, %v1005
          %v1118 = vsub.f32 %v970, %v1026
          %v1119 = vsub.f32 %v971, %v1047
          %v1120 = vsub.f32 %v972, %v1068
          %v1121 = vsub.f32 %v973, %v1005
          %v1122 = vsub.f32 %v974, %v1026
          %v1123 = vsub.f32 %v975, %v1047
          %v1124 = vsub.f32 %v976, %v1068
          %v1125 = vsub.f32 %v977, %v1005
          %v1126 = vsub.f32 %v978, %v1026
          %v1127 = vsub.f32 %v979, %v1047
          %v1128 = vsub.f32 %v980, %v1068
          %v1129 = vsub.f32 %v981, %v1005
          %v1130 = vsub.f32 %v982, %v1026
          %v1131 = vsub.f32 %v983, %v1047
          %v1132 = vsub.f32 %v984, %v1068
          %v1133 = vmul.f32 %v1069, 1.442695
          %v1134 = vpow.pop %v1133
          %v1135 = vmul.f32 %v1070, 1.442695
          %v1136 = vpow.pop %v1135
          %v1137 = vmul.f32 %v1071, 1.442695
          %v1138 = vpow.pop %v1137
          %v1139 = vmul.f32 %v1072, 1.442695
          %v1140 = vpow.pop %v1139
          %v1141 = vmul.f32 %v1073, 1.442695
          %v1142 = vpow.pop %v1141
          %v1143 = vmul.f32 %v1074, 1.442695
          %v1144 = vpow.pop %v1143
          %v1145 = vmul.f32 %v1075, 1.442695
          %v1146 = vpow.pop %v1145
          %v1147 = vmul.f32 %v1076, 1.442695
          %v1148 = vpow.pop %v1147
          %v1149 = vmul.f32 %v1077, 1.442695
          %v1150 = vpow.pop %v1149
          %v1151 = vmul.f32 %v1078, 1.442695
          %v1152 = vpow.pop %v1151
          %v1153 = vmul.f32 %v1079, 1.442695
          %v1154 = vpow.pop %v1153
          %v1155 = vmul.f32 %v1080, 1.442695
          %v1156 = vpow.pop %v1155
          %v1157 = vmul.f32 %v1081, 1.442695
          %v1158 = vpow.pop %v1157
          %v1159 = vmul.f32 %v1082, 1.442695
          %v1160 = vpow.pop %v1159
          %v1161 = vmul.f32 %v1083, 1.442695
          %v1162 = vpow.pop %v1161
          %v1163 = vmul.f32 %v1084, 1.442695
          %v1164 = vpow.pop %v1163
          %v1165 = vmul.f32 %v1085, 1.442695
          %v1166 = vpow.pop %v1165
          %v1167 = vmul.f32 %v1086, 1.442695
          %v1168 = vpow.pop %v1167
          %v1169 = vmul.f32 %v1087, 1.442695
          %v1170 = vpow.pop %v1169
          %v1171 = vmul.f32 %v1088, 1.442695
          %v1172 = vpow.pop %v1171
          %v1173 = vmul.f32 %v1089, 1.442695
          %v1174 = vpow.pop %v1173
          %v1175 = vmul.f32 %v1090, 1.442695
          %v1176 = vpow.pop %v1175
          %v1177 = vmul.f32 %v1091, 1.442695
          %v1178 = vpow.pop %v1177
          %v1179 = vmul.f32 %v1092, 1.442695
          %v1180 = vpow.pop %v1179
          %v1181 = vmul.f32 %v1093, 1.442695
          %v1182 = vpow.pop %v1181
          %v1183 = vmul.f32 %v1094, 1.442695
          %v1184 = vpow.pop %v1183
          %v1185 = vmul.f32 %v1095, 1.442695
          %v1186 = vpow.pop %v1185
          %v1187 = vmul.f32 %v1096, 1.442695
          %v1188 = vpow.pop %v1187
          %v1189 = vmul.f32 %v1097, 1.442695
          %v1190 = vpow.pop %v1189
          %v1191 = vmul.f32 %v1098, 1.442695
          %v1192 = vpow.pop %v1191
          %v1193 = vmul.f32 %v1099, 1.442695
          %v1194 = vpow.pop %v1193
          %v1195 = vmul.f32 %v1100, 1.442695
          %v1196 = vpow.pop %v1195
          %v1197 = vmul.f32 %v1101, 1.442695
          %v1198 = vpow.pop %v1197
          %v1199 = vmul.f32 %v1102, 1.442695
          %v1200 = vpow.pop %v1199
          %v1201 = vmul.f32 %v1103, 1.442695
          %v1202 = vpow.pop %v1201
          %v1203 = vmul.f32 %v1104, 1.442695
          %v1204 = vpow.pop %v1203
          %v1205 = vmul.f32 %v1105, 1.442695
          %v1206 = vpow.pop %v1205
          %v1207 = vmul.f32 %v1106, 1.442695
          %v1208 = vpow.pop %v1207
          %v1209 = vmul.f32 %v1107, 1.442695
          %v1210 = vpow.pop %v1209
          %v1211 = vmul.f32 %v1108, 1.442695
          %v1212 = vpow.pop %v1211
          %v1213 = vmul.f32 %v1109, 1.442695
          %v1214 = vpow.pop %v1213
          %v1215 = vmul.f32 %v1110, 1.442695
          %v1216 = vpow.pop %v1215
          %v1217 = vmul.f32 %v1111, 1.442695
          %v1218 = vpow.pop %v1217
          %v1219 = vmul.f32 %v1112, 1.442695
          %v1220 = vpow.pop %v1219
          %v1221 = vmul.f32 %v1113, 1.442695
          %v1222 = vpow.pop %v1221
          %v1223 = vmul.f32 %v1114, 1.442695
          %v1224 = vpow.pop %v1223
          %v1225 = vmul.f32 %v1115, 1.442695
          %v1226 = vpow.pop %v1225
          %v1227 = vmul.f32 %v1116, 1.442695
          %v1228 = vpow.pop %v1227
          %v1229 = vmul.f32 %v1117, 1.442695
          %v1230 = vpow.pop %v1229
          %v1231 = vmul.f32 %v1118, 1.442695
          %v1232 = vpow.pop %v1231
          %v1233 = vmul.f32 %v1119, 1.442695
          %v1234 = vpow.pop %v1233
          %v1235 = vmul.f32 %v1120, 1.442695
          %v1236 = vpow.pop %v1235
          %v1237 = vmul.f32 %v1121, 1.442695
          %v1238 = vpow.pop %v1237
          %v1239 = vmul.f32 %v1122, 1.442695
          %v1240 = vpow.pop %v1239
          %v1241 = vmul.f32 %v1123, 1.442695
          %v1242 = vpow.pop %v1241
          %v1243 = vmul.f32 %v1124, 1.442695
          %v1244 = vpow.pop %v1243
          %v1245 = vmul.f32 %v1125, 1.442695
          %v1246 = vpow.pop %v1245
          %v1247 = vmul.f32 %v1126, 1.442695
          %v1248 = vpow.pop %v1247
          %v1249 = vmul.f32 %v1127, 1.442695
          %v1250 = vpow.pop %v1249
          %v1251 = vmul.f32 %v1128, 1.442695
          %v1252 = vpow.pop %v1251
          %v1253 = vmul.f32 %v1129, 1.442695
          %v1254 = vpow.pop %v1253
          %v1255 = vmul.f32 %v1130, 1.442695
          %v1256 = vpow.pop %v1255
          %v1257 = vmul.f32 %v1131, 1.442695
          %v1258 = vpow.pop %v1257
          %v1259 = vmul.f32 %v1132, 1.442695
          %v1260 = vpow.pop %v1259
          %v1261 = vadd.f32 %v1134, %v1142
          %v1262 = vadd.f32 %v1261, %v1150
          %v1263 = vadd.f32 %v1262, %v1158
          %v1264 = vadd.f32 %v1263, %v1166
          %v1265 = vadd.f32 %v1264, %v1174
          %v1266 = vadd.f32 %v1265, %v1182
          %v1267 = vadd.f32 %v1266, %v1190
          %v1268 = vadd.f32 %v1267, %v1198
          %v1269 = vadd.f32 %v1268, %v1206
          %v1270 = vadd.f32 %v1269, %v1214
          %v1271 = vadd.f32 %v1270, %v1222
          %v1272 = vadd.f32 %v1271, %v1230
          %v1273 = vadd.f32 %v1272, %v1238
          %v1274 = vadd.f32 %v1273, %v1246
          %v1275 = vadd.f32 %v1274, %v1254
          %v1276 = vrot.slane %v1275, 4
          %v1277 = vadd.f32 %v1275, %v1276
          %v1278 = vrot.slane %v1277, 2
          %v1279 = vadd.f32 %v1277, %v1278
          %v1280 = vrot.slane %v1279, 1
          %v1281 = vadd.f32 %v1279, %v1280
          %v1282 = vadd.f32 %v1136, %v1144
          %v1283 = vadd.f32 %v1282, %v1152
          %v1284 = vadd.f32 %v1283, %v1160
          %v1285 = vadd.f32 %v1284, %v1168
          %v1286 = vadd.f32 %v1285, %v1176
          %v1287 = vadd.f32 %v1286, %v1184
          %v1288 = vadd.f32 %v1287, %v1192
          %v1289 = vadd.f32 %v1288, %v1200
          %v1290 = vadd.f32 %v1289, %v1208
          %v1291 = vadd.f32 %v1290, %v1216
          %v1292 = vadd.f32 %v1291, %v1224
          %v1293 = vadd.f32 %v1292, %v1232
          %v1294 = vadd.f32 %v1293, %v1240
          %v1295 = vadd.f32 %v1294, %v1248
          %v1296 = vadd.f32 %v1295, %v1256
          %v1297 = vrot.slane %v1296, 4
          %v1298 = vadd.f32 %v1296, %v1297
          %v1299 = vrot.slane %v1298, 2
          %v1300 = vadd.f32 %v1298, %v1299
          %v1301 = vrot.slane %v1300, 1
          %v1302 = vadd.f32 %v1300, %v1301
          %v1303 = vadd.f32 %v1138, %v1146
          %v1304 = vadd.f32 %v1303, %v1154
          %v1305 = vadd.f32 %v1304, %v1162
          %v1306 = vadd.f32 %v1305, %v1170
          %v1307 = vadd.f32 %v1306, %v1178
          %v1308 = vadd.f32 %v1307, %v1186
          %v1309 = vadd.f32 %v1308, %v1194
          %v1310 = vadd.f32 %v1309, %v1202
          %v1311 = vadd.f32 %v1310, %v1210
          %v1312 = vadd.f32 %v1311, %v1218
          %v1313 = vadd.f32 %v1312, %v1226
          %v1314 = vadd.f32 %v1313, %v1234
          %v1315 = vadd.f32 %v1314, %v1242
          %v1316 = vadd.f32 %v1315, %v1250
          %v1317 = vadd.f32 %v1316, %v1258
          %v1318 = vrot.slane %v1317, 4
          %v1319 = vadd.f32 %v1317, %v1318
          %v1320 = vrot.slane %v1319, 2
          %v1321 = vadd.f32 %v1319, %v1320
          %v1322 = vrot.slane %v1321, 1
          %v1323 = vadd.f32 %v1321, %v1322
          %v1324 = vadd.f32 %v1140, %v1148
          %v1325 = vadd.f32 %v1324, %v1156
          %v1326 = vadd.f32 %v1325, %v1164
          %v1327 = vadd.f32 %v1326, %v1172
          %v1328 = vadd.f32 %v1327, %v1180
          %v1329 = vadd.f32 %v1328, %v1188
          %v1330 = vadd.f32 %v1329, %v1196
          %v1331 = vadd.f32 %v1330, %v1204
          %v1332 = vadd.f32 %v1331, %v1212
          %v1333 = vadd.f32 %v1332, %v1220
          %v1334 = vadd.f32 %v1333, %v1228
          %v1335 = vadd.f32 %v1334, %v1236
          %v1336 = vadd.f32 %v1335, %v1244
          %v1337 = vadd.f32 %v1336, %v1252
          %v1338 = vadd.f32 %v1337, %v1260
          %v1339 = vrot.slane %v1338, 4
          %v1340 = vadd.f32 %v1338, %v1339
          %v1341 = vrot.slane %v1340, 2
          %v1342 = vadd.f32 %v1340, %v1341
          %v1343 = vrot.slane %v1342, 1
          %v1344 = vadd.f32 %v1342, %v1343
          %v1349 = vcombine.low %v1005, %v1026
          %v1350 = vcombine.low %v1047, %v1068
          %v1352 = vunpack.c.l.s4 1966171168
          %v1353 = vunpack.c.0.s8 %v1352
          %v1354 = vlaneseq
          %v1355 = vshrl.u32 %v1354, 7
          %v1356 = vsub.s32 %v1353, %v1355
          %v1357 = vrot.slane %v1349, %v1356
          %v1359 = vunpack.c.l.s4 1966171168
          %v1360 = vunpack.c.0.s8 %v1359
          %v1361 = vlaneseq
          %v1362 = vshrl.u32 %v1361, 7
          %v1363 = vsub.s32 %v1360, %v1362
          %v1364 = vrot.slane %v1350, %v1363
          %v1365 = vcombine.low %v1357, %v1364
          %v1367 = vunpack.c.l.s4 1966171168
          %v1368 = vunpack.c.0.s8 %v1367
          %v1369 = vlaneseq
          %v1370 = vshrl.u32 %v1369, 7
          %v1371 = vsub.s32 %v1368, %v1370
          %v1372 = vrot.slane %v1365, %v1371
          %v1374 = vlaneseq
          %vm1375 = vcmp.ge.s32.totalorder %v1374, 0
          %vm1376 = vcmp.lt.s32.totalorder %v1374, 512
          %vm1377 = vmand %vm1375, %vm1376
          %1378 = vst.msk [vmem:[%s256] ss:$2 sm:$0xf] %vm1377, %v1372
          %v1383 = vcombine.low %v1281, %v1302
          %v1384 = vcombine.low %v1323, %v1344
          %v1386 = vunpack.c.l.s4 1966171168
          %v1387 = vunpack.c.0.s8 %v1386
          %v1388 = vlaneseq
          %v1389 = vshrl.u32 %v1388, 7
          %v1390 = vsub.s32 %v1387, %v1389
          %v1391 = vrot.slane %v1383, %v1390
          %v1393 = vunpack.c.l.s4 1966171168
          %v1394 = vunpack.c.0.s8 %v1393
          %v1395 = vlaneseq
          %v1396 = vshrl.u32 %v1395, 7
          %v1397 = vsub.s32 %v1394, %v1396
          %v1398 = vrot.slane %v1384, %v1397
          %v1399 = vcombine.low %v1391, %v1398
          %v1401 = vunpack.c.l.s4 1966171168
          %v1402 = vunpack.c.0.s8 %v1401
          %v1403 = vlaneseq
          %v1404 = vshrl.u32 %v1403, 7
          %v1405 = vsub.s32 %v1402, %v1404
          %v1406 = vrot.slane %v1399, %v1405
          %s1408 = scalar_lea.vmem %s256, 1 [#allocation7]
          %1409 = vst.msk [vmem:[%s1408] ss:$2 sm:$0xf] %vm1377, %v1406
        $region44: #{tpu_custom_call.1} parent=27 // pred_fallthru
          _
        %1410 = vst [vmem:[%s262] sm:$0x1] 0.0
        %p1411 = scmp.lt.s32.totalorder %s276, 320
        // Predicated region
        $region45: #{tpu_custom_call.1} parent=27 // pred_check
          %p1412 = pneg %p1411
        $region46: #{tpu_custom_call.1} parent=27 // pred_check_branch
          %1414 = sbr.rel (%p1412) target = $region48
        $region47: #{tpu_custom_call.1} parent=27 // pred_region
          %v1415 = vlaneseq
          %v1416 = vshrl.u32 %v1415, 7
          %v1417 = vadd.s32 %v1416, 8
          %v1418 = vadd.s32 %v1416, 16
          %v1419 = vadd.s32 %v1416, 24
          %v1420 = vadd.s32 %v1416, 32
          %v1421 = vadd.s32 %v1416, 40
          %v1422 = vadd.s32 %v1416, 48
          %v1423 = vadd.s32 %v1416, 56
          %v1424 = vadd.s32 %v1416, 64
          %v1425 = vadd.s32 %v1416, 72
          %v1426 = vadd.s32 %v1416, 80
          %v1427 = vadd.s32 %v1416, 88
          %v1428 = vadd.s32 %v1416, 96
          %v1429 = vadd.s32 %v1416, 104
          %v1430 = vadd.s32 %v1416, 112
          %v1431 = vadd.s32 %v1416, 120
          %v1432 = vstv %s276
          %v1433 = vadd.s32 %v1416, %v1432
          %v1434 = vadd.s32 %v1417, %v1432
          %v1435 = vadd.s32 %v1418, %v1432
          %v1436 = vadd.s32 %v1419, %v1432
          %v1437 = vadd.s32 %v1420, %v1432
          %v1438 = vadd.s32 %v1421, %v1432
          %v1439 = vadd.s32 %v1422, %v1432
          %v1440 = vadd.s32 %v1423, %v1432
          %v1441 = vadd.s32 %v1424, %v1432
          %v1442 = vadd.s32 %v1425, %v1432
          %v1443 = vadd.s32 %v1426, %v1432
          %v1444 = vadd.s32 %v1427, %v1432
          %v1445 = vadd.s32 %v1428, %v1432
          %v1446 = vadd.s32 %v1429, %v1432
          %v1447 = vadd.s32 %v1430, %v1432
          %v1448 = vadd.s32 %v1431, %v1432
          %vm1449 = vcmp.lt.s32.totalorder %v1433, 320
          %vm1450 = vcmp.lt.s32.totalorder %v1434, 320
          %vm1451 = vcmp.lt.s32.totalorder %v1435, 320
          %vm1452 = vcmp.lt.s32.totalorder %v1436, 320
          %vm1453 = vcmp.lt.s32.totalorder %v1437, 320
          %vm1454 = vcmp.lt.s32.totalorder %v1438, 320
          %vm1455 = vcmp.lt.s32.totalorder %v1439, 320
          %vm1456 = vcmp.lt.s32.totalorder %v1440, 320
          %vm1457 = vcmp.lt.s32.totalorder %v1441, 320
          %vm1458 = vcmp.lt.s32.totalorder %v1442, 320
          %vm1459 = vcmp.lt.s32.totalorder %v1443, 320
          %vm1460 = vcmp.lt.s32.totalorder %v1444, 320
          %vm1461 = vcmp.lt.s32.totalorder %v1445, 320
          %vm1462 = vcmp.lt.s32.totalorder %v1446, 320
          %vm1463 = vcmp.lt.s32.totalorder %v1447, 320
          %vm1464 = vcmp.lt.s32.totalorder %v1448, 320
          %v1465 = vmax.f32 %v341, %v342
          %v1466 = vmax.f32 %v1465, %v343
          %v1467 = vmax.f32 %v1466, %v344
          %1468 = vmax.xlane.f32.xlu0 %v1467
          %v1469 = vpop.xlane.xlu0 %1468
          %v1470 = vmax.f32 %v345, %v346
          %v1471 = vmax.f32 %v1470, %v347
          %v1472 = vmax.f32 %v1471, %v348
          %1473 = vmax.xlane.f32.xlu0 %v1472
          %v1474 = vpop.xlane.xlu0 %1473
          %v1475 = vmax.f32 %v349, %v350
          %v1476 = vmax.f32 %v1475, %v351
          %v1477 = vmax.f32 %v1476, %v352
          %1478 = vmax.xlane.f32.xlu0 %v1477
          %v1479 = vpop.xlane.xlu0 %1478
          %v1480 = vmax.f32 %v353, %v354
          %v1481 = vmax.f32 %v1480, %v355
          %v1482 = vmax.f32 %v1481, %v356
          %1483 = vmax.xlane.f32.xlu0 %v1482
          %v1484 = vpop.xlane.xlu0 %1483
          %v1485 = vmax.f32 %v357, %v358
          %v1486 = vmax.f32 %v1485, %v359
          %v1487 = vmax.f32 %v1486, %v360
          %1488 = vmax.xlane.f32.xlu0 %v1487
          %v1489 = vpop.xlane.xlu0 %1488
          %v1490 = vmax.f32 %v361, %v362
          %v1491 = vmax.f32 %v1490, %v363
          %v1492 = vmax.f32 %v1491, %v364
          %1493 = vmax.xlane.f32.xlu0 %v1492
          %v1494 = vpop.xlane.xlu0 %1493
          %v1495 = vmax.f32 %v365, %v366
          %v1496 = vmax.f32 %v1495, %v367
          %v1497 = vmax.f32 %v1496, %v368
          %1498 = vmax.xlane.f32.xlu0 %v1497
          %v1499 = vpop.xlane.xlu0 %1498
          %v1500 = vmax.f32 %v369, %v370
          %v1501 = vmax.f32 %v1500, %v371
          %v1502 = vmax.f32 %v1501, %v372
          %1503 = vmax.xlane.f32.xlu0 %v1502
          %v1504 = vpop.xlane.xlu0 %1503
          %v1505 = vmax.f32 %v373, %v374
          %v1506 = vmax.f32 %v1505, %v375
          %v1507 = vmax.f32 %v1506, %v376
          %1508 = vmax.xlane.f32.xlu0 %v1507
          %v1509 = vpop.xlane.xlu0 %1508
          %v1510 = vmax.f32 %v377, %v378
          %v1511 = vmax.f32 %v1510, %v379
          %v1512 = vmax.f32 %v1511, %v380
          %1513 = vmax.xlane.f32.xlu0 %v1512
          %v1514 = vpop.xlane.xlu0 %1513
          %v1515 = vmax.f32 %v381, %v382
          %v1516 = vmax.f32 %v1515, %v383
          %v1517 = vmax.f32 %v1516, %v384
          %1518 = vmax.xlane.f32.xlu0 %v1517
          %v1519 = vpop.xlane.xlu0 %1518
          %v1520 = vmax.f32 %v385, %v386
          %v1521 = vmax.f32 %v1520, %v387
          %v1522 = vmax.f32 %v1521, %v388
          %1523 = vmax.xlane.f32.xlu0 %v1522
          %v1524 = vpop.xlane.xlu0 %1523
          %v1525 = vmax.f32 %v389, %v390
          %v1526 = vmax.f32 %v1525, %v391
          %v1527 = vmax.f32 %v1526, %v392
          %1528 = vmax.xlane.f32.xlu0 %v1527
          %v1529 = vpop.xlane.xlu0 %1528
          %v1530 = vmax.f32 %v393, %v394
          %v1531 = vmax.f32 %v1530, %v395
          %v1532 = vmax.f32 %v1531, %v396
          %1533 = vmax.xlane.f32.xlu0 %v1532
          %v1534 = vpop.xlane.xlu0 %1533
          %v1535 = vmax.f32 %v397, %v398
          %v1536 = vmax.f32 %v1535, %v399
          %v1537 = vmax.f32 %v1536, %v400
          %1538 = vmax.xlane.f32.xlu0 %v1537
          %v1539 = vpop.xlane.xlu0 %1538
          %v1540 = vmax.f32 %v401, %v402
          %v1541 = vmax.f32 %v1540, %v403
          %v1542 = vmax.f32 %v1541, %v404
          %1543 = vmax.xlane.f32.xlu0 %v1542
          %v1544 = vpop.xlane.xlu0 %1543
          %v1545 = vsub.f32 %v341, %v1469
          %v1546 = vsub.f32 %v342, %v1469
          %v1547 = vsub.f32 %v343, %v1469
          %v1548 = vsub.f32 %v344, %v1469
          %v1549 = vsub.f32 %v345, %v1474
          %v1550 = vsub.f32 %v346, %v1474
          %v1551 = vsub.f32 %v347, %v1474
          %v1552 = vsub.f32 %v348, %v1474
          %v1553 = vsub.f32 %v349, %v1479
          %v1554 = vsub.f32 %v350, %v1479
          %v1555 = vsub.f32 %v351, %v1479
          %v1556 = vsub.f32 %v352, %v1479
          %v1557 = vsub.f32 %v353, %v1484
          %v1558 = vsub.f32 %v354, %v1484
          %v1559 = vsub.f32 %v355, %v1484
          %v1560 = vsub.f32 %v356, %v1484
          %v1561 = vsub.f32 %v357, %v1489
          %v1562 = vsub.f32 %v358, %v1489
          %v1563 = vsub.f32 %v359, %v1489
          %v1564 = vsub.f32 %v360, %v1489
          %v1565 = vsub.f32 %v361, %v1494
          %v1566 = vsub.f32 %v362, %v1494
          %v1567 = vsub.f32 %v363, %v1494
          %v1568 = vsub.f32 %v364, %v1494
          %v1569 = vsub.f32 %v365, %v1499
          %v1570 = vsub.f32 %v366, %v1499
          %v1571 = vsub.f32 %v367, %v1499
          %v1572 = vsub.f32 %v368, %v1499
          %v1573 = vsub.f32 %v369, %v1504
          %v1574 = vsub.f32 %v370, %v1504
          %v1575 = vsub.f32 %v371, %v1504
          %v1576 = vsub.f32 %v372, %v1504
          %v1577 = vsub.f32 %v373, %v1509
          %v1578 = vsub.f32 %v374, %v1509
          %v1579 = vsub.f32 %v375, %v1509
          %v1580 = vsub.f32 %v376, %v1509
          %v1581 = vsub.f32 %v377, %v1514
          %v1582 = vsub.f32 %v378, %v1514
          %v1583 = vsub.f32 %v379, %v1514
          %v1584 = vsub.f32 %v380, %v1514
          %v1585 = vsub.f32 %v381, %v1519
          %v1586 = vsub.f32 %v382, %v1519
          %v1587 = vsub.f32 %v383, %v1519
          %v1588 = vsub.f32 %v384, %v1519
          %v1589 = vsub.f32 %v385, %v1524
          %v1590 = vsub.f32 %v386, %v1524
          %v1591 = vsub.f32 %v387, %v1524
          %v1592 = vsub.f32 %v388, %v1524
          %v1593 = vsub.f32 %v389, %v1529
          %v1594 = vsub.f32 %v390, %v1529
          %v1595 = vsub.f32 %v391, %v1529
          %v1596 = vsub.f32 %v392, %v1529
          %v1597 = vsub.f32 %v393, %v1534
          %v1598 = vsub.f32 %v394, %v1534
          %v1599 = vsub.f32 %v395, %v1534
          %v1600 = vsub.f32 %v396, %v1534
          %v1601 = vsub.f32 %v397, %v1539
          %v1602 = vsub.f32 %v398, %v1539
          %v1603 = vsub.f32 %v399, %v1539
          %v1604 = vsub.f32 %v400, %v1539
          %v1605 = vsub.f32 %v401, %v1544
          %v1606 = vsub.f32 %v402, %v1544
          %v1607 = vsub.f32 %v403, %v1544
          %v1608 = vsub.f32 %v404, %v1544
          %v1609 = vmul.f32 %v1545, 1.442695
          %v1610 = vpow.pop %v1609
          %v1611 = vmul.f32 %v1546, 1.442695
          %v1612 = vpow.pop %v1611
          %v1613 = vmul.f32 %v1547, 1.442695
          %v1614 = vpow.pop %v1613
          %v1615 = vmul.f32 %v1548, 1.442695
          %v1616 = vpow.pop %v1615
          %v1617 = vmul.f32 %v1549, 1.442695
          %v1618 = vpow.pop %v1617
          %v1619 = vmul.f32 %v1550, 1.442695
          %v1620 = vpow.pop %v1619
          %v1621 = vmul.f32 %v1551, 1.442695
          %v1622 = vpow.pop %v1621
          %v1623 = vmul.f32 %v1552, 1.442695
          %v1624 = vpow.pop %v1623
          %v1625 = vmul.f32 %v1553, 1.442695
          %v1626 = vpow.pop %v1625
          %v1627 = vmul.f32 %v1554, 1.442695
          %v1628 = vpow.pop %v1627
          %v1629 = vmul.f32 %v1555, 1.442695
          %v1630 = vpow.pop %v1629
          %v1631 = vmul.f32 %v1556, 1.442695
          %v1632 = vpow.pop %v1631
          %v1633 = vmul.f32 %v1557, 1.442695
          %v1634 = vpow.pop %v1633
          %v1635 = vmul.f32 %v1558, 1.442695
          %v1636 = vpow.pop %v1635
          %v1637 = vmul.f32 %v1559, 1.442695
          %v1638 = vpow.pop %v1637
          %v1639 = vmul.f32 %v1560, 1.442695
          %v1640 = vpow.pop %v1639
          %v1641 = vmul.f32 %v1561, 1.442695
          %v1642 = vpow.pop %v1641
          %v1643 = vmul.f32 %v1562, 1.442695
          %v1644 = vpow.pop %v1643
          %v1645 = vmul.f32 %v1563, 1.442695
          %v1646 = vpow.pop %v1645
          %v1647 = vmul.f32 %v1564, 1.442695
          %v1648 = vpow.pop %v1647
          %v1649 = vmul.f32 %v1565, 1.442695
          %v1650 = vpow.pop %v1649
          %v1651 = vmul.f32 %v1566, 1.442695
          %v1652 = vpow.pop %v1651
          %v1653 = vmul.f32 %v1567, 1.442695
          %v1654 = vpow.pop %v1653
          %v1655 = vmul.f32 %v1568, 1.442695
          %v1656 = vpow.pop %v1655
          %v1657 = vmul.f32 %v1569, 1.442695
          %v1658 = vpow.pop %v1657
          %v1659 = vmul.f32 %v1570, 1.442695
          %v1660 = vpow.pop %v1659
          %v1661 = vmul.f32 %v1571, 1.442695
          %v1662 = vpow.pop %v1661
          %v1663 = vmul.f32 %v1572, 1.442695
          %v1664 = vpow.pop %v1663
          %v1665 = vmul.f32 %v1573, 1.442695
          %v1666 = vpow.pop %v1665
          %v1667 = vmul.f32 %v1574, 1.442695
          %v1668 = vpow.pop %v1667
          %v1669 = vmul.f32 %v1575, 1.442695
          %v1670 = vpow.pop %v1669
          %v1671 = vmul.f32 %v1576, 1.442695
          %v1672 = vpow.pop %v1671
          %v1673 = vmul.f32 %v1577, 1.442695
          %v1674 = vpow.pop %v1673
          %v1675 = vmul.f32 %v1578, 1.442695
          %v1676 = vpow.pop %v1675
          %v1677 = vmul.f32 %v1579, 1.442695
          %v1678 = vpow.pop %v1677
          %v1679 = vmul.f32 %v1580, 1.442695
          %v1680 = vpow.pop %v1679
          %v1681 = vmul.f32 %v1581, 1.442695
          %v1682 = vpow.pop %v1681
          %v1683 = vmul.f32 %v1582, 1.442695
          %v1684 = vpow.pop %v1683
          %v1685 = vmul.f32 %v1583, 1.442695
          %v1686 = vpow.pop %v1685
          %v1687 = vmul.f32 %v1584, 1.442695
          %v1688 = vpow.pop %v1687
          %v1689 = vmul.f32 %v1585, 1.442695
          %v1690 = vpow.pop %v1689
          %v1691 = vmul.f32 %v1586, 1.442695
          %v1692 = vpow.pop %v1691
          %v1693 = vmul.f32 %v1587, 1.442695
          %v1694 = vpow.pop %v1693
          %v1695 = vmul.f32 %v1588, 1.442695
          %v1696 = vpow.pop %v1695
          %v1697 = vmul.f32 %v1589, 1.442695
          %v1698 = vpow.pop %v1697
          %v1699 = vmul.f32 %v1590, 1.442695
          %v1700 = vpow.pop %v1699
          %v1701 = vmul.f32 %v1591, 1.442695
          %v1702 = vpow.pop %v1701
          %v1703 = vmul.f32 %v1592, 1.442695
          %v1704 = vpow.pop %v1703
          %v1705 = vmul.f32 %v1593, 1.442695
          %v1706 = vpow.pop %v1705
          %v1707 = vmul.f32 %v1594, 1.442695
          %v1708 = vpow.pop %v1707
          %v1709 = vmul.f32 %v1595, 1.442695
          %v1710 = vpow.pop %v1709
          %v1711 = vmul.f32 %v1596, 1.442695
          %v1712 = vpow.pop %v1711
          %v1713 = vmul.f32 %v1597, 1.442695
          %v1714 = vpow.pop %v1713
          %v1715 = vmul.f32 %v1598, 1.442695
          %v1716 = vpow.pop %v1715
          %v1717 = vmul.f32 %v1599, 1.442695
          %v1718 = vpow.pop %v1717
          %v1719 = vmul.f32 %v1600, 1.442695
          %v1720 = vpow.pop %v1719
          %v1721 = vmul.f32 %v1601, 1.442695
          %v1722 = vpow.pop %v1721
          %v1723 = vmul.f32 %v1602, 1.442695
          %v1724 = vpow.pop %v1723
          %v1725 = vmul.f32 %v1603, 1.442695
          %v1726 = vpow.pop %v1725
          %v1727 = vmul.f32 %v1604, 1.442695
          %v1728 = vpow.pop %v1727
          %v1729 = vmul.f32 %v1605, 1.442695
          %v1730 = vpow.pop %v1729
          %v1731 = vmul.f32 %v1606, 1.442695
          %v1732 = vpow.pop %v1731
          %v1733 = vmul.f32 %v1607, 1.442695
          %v1734 = vpow.pop %v1733
          %v1735 = vmul.f32 %v1608, 1.442695
          %v1736 = vpow.pop %v1735
          %v1737 = vadd.f32 %v1610, %v1612
          %v1738 = vadd.f32 %v1737, %v1614
          %v1739 = vadd.f32 %v1738, %v1616
          %1740 = vadd.xlane.f32.xlu0 %v1739
          %v1741 = vpop.xlane.xlu0 %1740
          %v1742 = vadd.f32 %v1618, %v1620
          %v1743 = vadd.f32 %v1742, %v1622
          %v1744 = vadd.f32 %v1743, %v1624
          %1745 = vadd.xlane.f32.xlu0 %v1744
          %v1746 = vpop.xlane.xlu0 %1745
          %v1747 = vadd.f32 %v1626, %v1628
          %v1748 = vadd.f32 %v1747, %v1630
          %v1749 = vadd.f32 %v1748, %v1632
          %1750 = vadd.xlane.f32.xlu0 %v1749
          %v1751 = vpop.xlane.xlu0 %1750
          %v1752 = vadd.f32 %v1634, %v1636
          %v1753 = vadd.f32 %v1752, %v1638
          %v1754 = vadd.f32 %v1753, %v1640
          %1755 = vadd.xlane.f32.xlu0 %v1754
          %v1756 = vpop.xlane.xlu0 %1755
          %v1757 = vadd.f32 %v1642, %v1644
          %v1758 = vadd.f32 %v1757, %v1646
          %v1759 = vadd.f32 %v1758, %v1648
          %1760 = vadd.xlane.f32.xlu0 %v1759
          %v1761 = vpop.xlane.xlu0 %1760
          %v1762 = vadd.f32 %v1650, %v1652
          %v1763 = vadd.f32 %v1762, %v1654
          %v1764 = vadd.f32 %v1763, %v1656
          %1765 = vadd.xlane.f32.xlu0 %v1764
          %v1766 = vpop.xlane.xlu0 %1765
          %v1767 = vadd.f32 %v1658, %v1660
          %v1768 = vadd.f32 %v1767, %v1662
          %v1769 = vadd.f32 %v1768, %v1664
          %1770 = vadd.xlane.f32.xlu0 %v1769
          %v1771 = vpop.xlane.xlu0 %1770
          %v1772 = vadd.f32 %v1666, %v1668
          %v1773 = vadd.f32 %v1772, %v1670
          %v1774 = vadd.f32 %v1773, %v1672
          %1775 = vadd.xlane.f32.xlu0 %v1774
          %v1776 = vpop.xlane.xlu0 %1775
          %v1777 = vadd.f32 %v1674, %v1676
          %v1778 = vadd.f32 %v1777, %v1678
          %v1779 = vadd.f32 %v1778, %v1680
          %1780 = vadd.xlane.f32.xlu0 %v1779
          %v1781 = vpop.xlane.xlu0 %1780
          %v1782 = vadd.f32 %v1682, %v1684
          %v1783 = vadd.f32 %v1782, %v1686
          %v1784 = vadd.f32 %v1783, %v1688
          %1785 = vadd.xlane.f32.xlu0 %v1784
          %v1786 = vpop.xlane.xlu0 %1785
          %v1787 = vadd.f32 %v1690, %v1692
          %v1788 = vadd.f32 %v1787, %v1694
          %v1789 = vadd.f32 %v1788, %v1696
          %1790 = vadd.xlane.f32.xlu0 %v1789
          %v1791 = vpop.xlane.xlu0 %1790
          %v1792 = vadd.f32 %v1698, %v1700
          %v1793 = vadd.f32 %v1792, %v1702
          %v1794 = vadd.f32 %v1793, %v1704
          %1795 = vadd.xlane.f32.xlu0 %v1794
          %v1796 = vpop.xlane.xlu0 %1795
          %v1797 = vadd.f32 %v1706, %v1708
          %v1798 = vadd.f32 %v1797, %v1710
          %v1799 = vadd.f32 %v1798, %v1712
          %1800 = vadd.xlane.f32.xlu0 %v1799
          %v1801 = vpop.xlane.xlu0 %1800
          %v1802 = vadd.f32 %v1714, %v1716
          %v1803 = vadd.f32 %v1802, %v1718
          %v1804 = vadd.f32 %v1803, %v1720
          %1805 = vadd.xlane.f32.xlu0 %v1804
          %v1806 = vpop.xlane.xlu0 %1805
          %v1807 = vadd.f32 %v1722, %v1724
          %v1808 = vadd.f32 %v1807, %v1726
          %v1809 = vadd.f32 %v1808, %v1728
          %1810 = vadd.xlane.f32.xlu0 %v1809
          %v1811 = vpop.xlane.xlu0 %1810
          %v1812 = vadd.f32 %v1730, %v1732
          %v1813 = vadd.f32 %v1812, %v1734
          %v1814 = vadd.f32 %v1813, %v1736
          %1815 = vadd.xlane.f32.xlu0 %v1814
          %v1816 = vpop.xlane.xlu0 %1815
          %v1817 = vlog2.pop %v1741
          %v1818 = vmul.f32 %v1817, 0.6931472
          %v1819 = vlog2.pop %v1746
          %v1820 = vmul.f32 %v1819, 0.6931472
          %v1821 = vlog2.pop %v1751
          %v1822 = vmul.f32 %v1821, 0.6931472
          %v1823 = vlog2.pop %v1756
          %v1824 = vmul.f32 %v1823, 0.6931472
          %v1825 = vlog2.pop %v1761
          %v1826 = vmul.f32 %v1825, 0.6931472
          %v1827 = vlog2.pop %v1766
          %v1828 = vmul.f32 %v1827, 0.6931472
          %v1829 = vlog2.pop %v1771
          %v1830 = vmul.f32 %v1829, 0.6931472
          %v1831 = vlog2.pop %v1776
          %v1832 = vmul.f32 %v1831, 0.6931472
          %v1833 = vlog2.pop %v1781
          %v1834 = vmul.f32 %v1833, 0.6931472
          %v1835 = vlog2.pop %v1786
          %v1836 = vmul.f32 %v1835, 0.6931472
          %v1837 = vlog2.pop %v1791
          %v1838 = vmul.f32 %v1837, 0.6931472
          %v1839 = vlog2.pop %v1796
          %v1840 = vmul.f32 %v1839, 0.6931472
          %v1841 = vlog2.pop %v1801
          %v1842 = vmul.f32 %v1841, 0.6931472
          %v1843 = vlog2.pop %v1806
          %v1844 = vmul.f32 %v1843, 0.6931472
          %v1845 = vlog2.pop %v1811
          %v1846 = vmul.f32 %v1845, 0.6931472
          %v1847 = vlog2.pop %v1816
          %v1848 = vmul.f32 %v1847, 0.6931472
          %v1849 = vadd.f32 %v1818, %v1469
          %v1850 = vadd.f32 %v1820, %v1474
          %v1851 = vadd.f32 %v1822, %v1479
          %v1852 = vadd.f32 %v1824, %v1484
          %v1853 = vadd.f32 %v1826, %v1489
          %v1854 = vadd.f32 %v1828, %v1494
          %v1855 = vadd.f32 %v1830, %v1499
          %v1856 = vadd.f32 %v1832, %v1504
          %v1857 = vadd.f32 %v1834, %v1509
          %v1858 = vadd.f32 %v1836, %v1514
          %v1859 = vadd.f32 %v1838, %v1519
          %v1860 = vadd.f32 %v1840, %v1524
          %v1861 = vadd.f32 %v1842, %v1529
          %v1862 = vadd.f32 %v1844, %v1534
          %v1863 = vadd.f32 %v1846, %v1539
          %v1864 = vadd.f32 %v1848, %v1544
          %v1865 = vsel %vm1449, %v1849, 0.0
          %v1866 = vsel %vm1450, %v1850, 0.0
          %v1867 = vsel %vm1451, %v1851, 0.0
          %v1868 = vsel %vm1452, %v1852, 0.0
          %v1869 = vsel %vm1453, %v1853, 0.0
          %v1870 = vsel %vm1454, %v1854, 0.0
          %v1871 = vsel %vm1455, %v1855, 0.0
          %v1872 = vsel %vm1456, %v1856, 0.0
          %v1873 = vsel %vm1457, %v1857, 0.0
          %v1874 = vsel %vm1458, %v1858, 0.0
          %v1875 = vsel %vm1459, %v1859, 0.0
          %v1876 = vsel %vm1460, %v1860, 0.0
          %v1877 = vsel %vm1461, %v1861, 0.0
          %v1878 = vsel %vm1462, %v1862, 0.0
          %v1879 = vsel %vm1463, %v1863, 0.0
          %v1880 = vsel %vm1464, %v1864, 0.0
          %vm1881 = vcmask 7168
          %v1882 = vsel %vm1881, %v1865, 0.0
          %v1883 = vsel %vm1881, %v1866, 0.0
          %v1884 = vadd.f32 %v1882, %v1883
          %v1885 = vsel %vm1881, %v1867, 0.0
          %v1886 = vadd.f32 %v1884, %v1885
          %v1887 = vsel %vm1881, %v1868, 0.0
          %v1888 = vadd.f32 %v1886, %v1887
          %v1889 = vsel %vm1881, %v1869, 0.0
          %v1890 = vadd.f32 %v1888, %v1889
          %v1891 = vsel %vm1881, %v1870, 0.0
          %v1892 = vadd.f32 %v1890, %v1891
          %v1893 = vsel %vm1881, %v1871, 0.0
          %v1894 = vadd.f32 %v1892, %v1893
          %v1895 = vsel %vm1881, %v1872, 0.0
          %v1896 = vadd.f32 %v1894, %v1895
          %v1897 = vsel %vm1881, %v1873, 0.0
          %v1898 = vadd.f32 %v1896, %v1897
          %v1899 = vsel %vm1881, %v1874, 0.0
          %v1900 = vadd.f32 %v1898, %v1899
          %v1901 = vsel %vm1881, %v1875, 0.0
          %v1902 = vadd.f32 %v1900, %v1901
          %v1903 = vsel %vm1881, %v1876, 0.0
          %v1904 = vadd.f32 %v1902, %v1903
          %v1905 = vsel %vm1881, %v1877, 0.0
          %v1906 = vadd.f32 %v1904, %v1905
          %v1907 = vsel %vm1881, %v1878, 0.0
          %v1908 = vadd.f32 %v1906, %v1907
          %v1909 = vsel %vm1881, %v1879, 0.0
          %v1910 = vadd.f32 %v1908, %v1909
          %v1911 = vsel %vm1881, %v1880, 0.0
          %v1912 = vadd.f32 %v1910, %v1911
          %1913 = vadd.xlane.f32.xlu0 %v1912
          %v1914 = vpop.xlane.xlu0 %1913
          %v1915 = vrot.slane %v1914, 4
          %v1916 = vadd.f32 %v1914, %v1915
          %v1917 = vrot.slane %v1916, 2
          %v1918 = vadd.f32 %v1916, %v1917
          %v1919 = vrot.slane %v1918, 1
          %v1920 = vadd.f32 %v1918, %v1919
          %s1921 = vtos %v1920
          %v1922 = vld [vmem:[%s231] sm:$0xff]
          %v1923 = vld [vmem:[%s231 + $0x8] sm:$0xff]
          %v1924 = vld [vmem:[%s231 + $0x10] sm:$0xff]
          %v1925 = vld [vmem:[%s231 + $0x18] sm:$0xff]
          %v1926 = vld [vmem:[%s231 + $0x20] sm:$0xff]
          %v1927 = vld [vmem:[%s231 + $0x28] sm:$0xff]
          %v1928 = vld [vmem:[%s231 + $0x30] sm:$0xff]
          %v1929 = vld [vmem:[%s231 + $0x38] sm:$0xff]
          %v1930 = vld [vmem:[%s231 + $0x40] sm:$0xff]
          %v1931 = vld [vmem:[%s231 + $0x48] sm:$0xff]
          %v1932 = vld [vmem:[%s231 + $0x50] sm:$0xff]
          %v1933 = vld [vmem:[%s231 + $0x58] sm:$0xff]
          %v1934 = vld [vmem:[%s231 + $0x60] sm:$0xff]
          %v1935 = vld [vmem:[%s231 + $0x68] sm:$0xff]
          %v1936 = vld [vmem:[%s231 + $0x70] sm:$0xff]
          %v1937 = vld [vmem:[%s231 + $0x78] sm:$0xff]
          %v1938 = vmul.f32 %v1922, 20.0
          %v1939 = vmul.f32 %v1923, 20.0
          %v1940 = vmul.f32 %v1924, 20.0
          %v1941 = vmul.f32 %v1925, 20.0
          %v1942 = vmul.f32 %v1926, 20.0
          %v1943 = vmul.f32 %v1927, 20.0
          %v1944 = vmul.f32 %v1928, 20.0
          %v1945 = vmul.f32 %v1929, 20.0
          %v1946 = vmul.f32 %v1930, 20.0
          %v1947 = vmul.f32 %v1931, 20.0
          %v1948 = vmul.f32 %v1932, 20.0
          %v1949 = vmul.f32 %v1933, 20.0
          %v1950 = vmul.f32 %v1934, 20.0
          %v1951 = vmul.f32 %v1935, 20.0
          %v1952 = vmul.f32 %v1936, 20.0
          %v1953 = vmul.f32 %v1937, 20.0
          %p1954 = scmp.lt.s32.totalorder %s276, 384
          %s1955 = scalar_select %p1954, %s276, 384
          %v1956 = vlaneseq
          %v1957 = vand.u32 %v1956, 127
          %v1958 = vstv %s1955
          %v1959 = vadd.s32 %v1957, %v1958
          %vm1960 = vcmp.eq.s32.totalorder %v1959, %v1433
          %vm1961 = vcmp.eq.s32.totalorder %v1959, %v1434
          %vm1962 = vcmp.eq.s32.totalorder %v1959, %v1435
          %vm1963 = vcmp.eq.s32.totalorder %v1959, %v1436
          %vm1964 = vcmp.eq.s32.totalorder %v1959, %v1437
          %vm1965 = vcmp.eq.s32.totalorder %v1959, %v1438
          %vm1966 = vcmp.eq.s32.totalorder %v1959, %v1439
          %vm1967 = vcmp.eq.s32.totalorder %v1959, %v1440
          %vm1968 = vcmp.eq.s32.totalorder %v1959, %v1441
          %vm1969 = vcmp.eq.s32.totalorder %v1959, %v1442
          %vm1970 = vcmp.eq.s32.totalorder %v1959, %v1443
          %vm1971 = vcmp.eq.s32.totalorder %v1959, %v1444
          %vm1972 = vcmp.eq.s32.totalorder %v1959, %v1445
          %vm1973 = vcmp.eq.s32.totalorder %v1959, %v1446
          %vm1974 = vcmp.eq.s32.totalorder %v1959, %v1447
          %vm1975 = vcmp.eq.s32.totalorder %v1959, %v1448
          %v1976 = vsel %vm1449, 1, 0
          %v1977 = vsel %vm1450, 1, 0
          %v1978 = vsel %vm1451, 1, 0
          %v1979 = vsel %vm1452, 1, 0
          %v1980 = vsel %vm1453, 1, 0
          %v1981 = vsel %vm1454, 1, 0
          %v1982 = vsel %vm1455, 1, 0
          %v1983 = vsel %vm1456, 1, 0
          %v1984 = vsel %vm1457, 1, 0
          %v1985 = vsel %vm1458, 1, 0
          %v1986 = vsel %vm1459, 1, 0
          %v1987 = vsel %vm1460, 1, 0
          %v1988 = vsel %vm1461, 1, 0
          %v1989 = vsel %vm1462, 1, 0
          %v1990 = vsel %vm1463, 1, 0
          %v1991 = vsel %vm1464, 1, 0
          %vm1992 = vcmp.eq.s32.totalorder %v1976, 1
          %vm1993 = vcmp.eq.s32.totalorder %v1977, 1
          %vm1994 = vcmp.eq.s32.totalorder %v1978, 1
          %vm1995 = vcmp.eq.s32.totalorder %v1979, 1
          %vm1996 = vcmp.eq.s32.totalorder %v1980, 1
          %vm1997 = vcmp.eq.s32.totalorder %v1981, 1
          %vm1998 = vcmp.eq.s32.totalorder %v1982, 1
          %vm1999 = vcmp.eq.s32.totalorder %v1983, 1
          %vm2000 = vcmp.eq.s32.totalorder %v1984, 1
          %vm2001 = vcmp.eq.s32.totalorder %v1985, 1
          %vm2002 = vcmp.eq.s32.totalorder %v1986, 1
          %vm2003 = vcmp.eq.s32.totalorder %v1987, 1
          %vm2004 = vcmp.eq.s32.totalorder %v1988, 1
          %vm2005 = vcmp.eq.s32.totalorder %v1989, 1
          %vm2006 = vcmp.eq.s32.totalorder %v1990, 1
          %vm2007 = vcmp.eq.s32.totalorder %v1991, 1
          %vm2008 = vmand %vm1960, %vm1992
          %vm2009 = vmand %vm1961, %vm1993
          %vm2010 = vmand %vm1962, %vm1994
          %vm2011 = vmand %vm1963, %vm1995
          %vm2012 = vmand %vm1964, %vm1996
          %vm2013 = vmand %vm1965, %vm1997
          %vm2014 = vmand %vm1966, %vm1998
          %vm2015 = vmand %vm1967, %vm1999
          %vm2016 = vmand %vm1968, %vm2000
          %vm2017 = vmand %vm1969, %vm2001
          %vm2018 = vmand %vm1970, %vm2002
          %vm2019 = vmand %vm1971, %vm2003
          %vm2020 = vmand %vm1972, %vm2004
          %vm2021 = vmand %vm1973, %vm2005
          %vm2022 = vmand %vm1974, %vm2006
          %vm2023 = vmand %vm1975, %vm2007
          %v2024 = vsel %vm2008, %v1938, 0.0
          %v2025 = vsel %vm2009, %v1939, 0.0
          %v2026 = vsel %vm2010, %v1940, 0.0
          %v2027 = vsel %vm2011, %v1941, 0.0
          %v2028 = vsel %vm2012, %v1942, 0.0
          %v2029 = vsel %vm2013, %v1943, 0.0
          %v2030 = vsel %vm2014, %v1944, 0.0
          %v2031 = vsel %vm2015, %v1945, 0.0
          %v2032 = vsel %vm2016, %v1946, 0.0
          %v2033 = vsel %vm2017, %v1947, 0.0
          %v2034 = vsel %vm2018, %v1948, 0.0
          %v2035 = vsel %vm2019, %v1949, 0.0
          %v2036 = vsel %vm2020, %v1950, 0.0
          %v2037 = vsel %vm2021, %v1951, 0.0
          %v2038 = vsel %vm2022, %v1952, 0.0
          %v2039 = vsel %vm2023, %v1953, 0.0
          %v2040 = vadd.f32 %v2024, %v2025
          %v2041 = vadd.f32 %v2040, %v2026
          %v2042 = vadd.f32 %v2041, %v2027
          %v2043 = vadd.f32 %v2042, %v2028
          %v2044 = vadd.f32 %v2043, %v2029
          %v2045 = vadd.f32 %v2044, %v2030
          %v2046 = vadd.f32 %v2045, %v2031
          %v2047 = vadd.f32 %v2046, %v2032
          %v2048 = vadd.f32 %v2047, %v2033
          %v2049 = vadd.f32 %v2048, %v2034
          %v2050 = vadd.f32 %v2049, %v2035
          %v2051 = vadd.f32 %v2050, %v2036
          %v2052 = vadd.f32 %v2051, %v2037
          %v2053 = vadd.f32 %v2052, %v2038
          %v2054 = vadd.f32 %v2053, %v2039
          %2055 = vadd.xlane.f32.xlu0 %v2054
          %v2056 = vpop.xlane.xlu0 %2055
          %v2057 = vrot.slane %v2056, 4
          %v2058 = vadd.f32 %v2056, %v2057
          %v2059 = vrot.slane %v2058, 2
          %v2060 = vadd.f32 %v2058, %v2059
          %v2061 = vrot.slane %v2060, 1
          %v2062 = vadd.f32 %v2060, %v2061
          %s2063 = vtos %v2062
          %vm2064 = vcmp.eq.s32.totalorder %v1957, 0
          %v2065 = vstv %s1921
          %v2066 = vsel %vm2064, %v2065, 0.0
          %vm2067 = vcmp.eq.s32.totalorder %v1957, 1
          %v2068 = vstv %s2063
          %v2069 = vsel %vm2067, %v2068, 0.0
          %v2070 = vadd.f32 %v2066, %v2069
          %2071 = vst [vmem:[%s262] sm:$0x1] %v2070
        $region48: #{tpu_custom_call.1} parent=27 // pred_fallthru
          _
        %s2072 = sand.u32 %s93, 1
        %s2073 = scalar_lea.sflag [#allocation4], %s2072
        %s2074 = sand.u32 %s93, 1
        %s2075 = smul.addr %s2074, 8
        %s2076 = scalar_lea.vmem [#allocation7], %s2075
        %s2077 = sand.u32 %s119, 1
        %s2078 = scalar_lea.sflag [#allocation9], %s2077
        %s2079 = sand.u32 %s119, 1
        %s2080 = scalar_lea.vmem [#allocation8], %s2079
        // Predicated region
        $region49: #{tpu_custom_call.1} parent=27 // pred_check
          %p2081 = pneg %p103
        $region50: #{tpu_custom_call.1} parent=27 // pred_check_branch
          %2083 = sbr.rel (%p2081) target = $region52
        $region51: #{tpu_custom_call.1} parent=27 // pred_region
          %s2085 = ssub.s32 128, 128
          %2086 = vsyncadd %s2073, %s2085
          %s2087 = smul.addr %s27, 4
          %s2088 = smul.addr %s2087, 32
          %s2089 = scalar_lea.hbm %s2, %s2088
          %s2091 = sshll.u32 %s2076, 4
          %s2092 = int_to_ptr.vmem [resolvable:$true] %s2091
          %2094 = dma.vmem_to_hbm [thread:$0]  %s2092, 128, %s2089, %s2073
        $region52: #{tpu_custom_call.1} parent=27 // pred_fallthru
          _
        // Predicated region
        $region53: #{tpu_custom_call.1} parent=27 // pred_check
          %p2095 = pneg %p129
        $region54: #{tpu_custom_call.1} parent=27 // pred_check_branch
          %2097 = sbr.rel (%p2095) target = $region56
        $region55: #{tpu_custom_call.1} parent=27 // pred_region
          %s2099 = ssub.s32 16, 16
          %2100 = vsyncadd %s2078, %s2099
          %s2101 = smul.addr %s27, 16
          %s2102 = scalar_lea.hbm %s3, %s2101
          %s2104 = sshll.u32 %s2080, 4
          %s2105 = int_to_ptr.vmem [resolvable:$true] %s2104
          %2107 = dma.vmem_to_hbm [thread:$0]  %s2105, 16, %s2102, %s2078
        $region56: #{tpu_custom_call.1} parent=27 // pred_fallthru
          _
      $region28: #{tpu_custom_call.1} parent=5 // pred_fallthru
        _
      %p2108 = scmp.le.s32.totalorder 2, %s22
      // Predicated region
      $region57: #{tpu_custom_call.1} parent=5 // pred_check
        %p2109 = pneg %p2108
      $region58: #{tpu_custom_call.1} parent=5 // pred_check_branch
        %2111 = sbr.rel (%p2109) target = $region60
      $region59: #{tpu_custom_call.1} parent=5 // pred_region
        %s2112 = ssub.s32 %s22, 2
        // Predicated region
        $region61: #{tpu_custom_call.1} parent=59 // pred_check
          %p2113 = pneg %p109
        $region62: #{tpu_custom_call.1} parent=59 // pred_check_branch
          %2115 = sbr.rel (%p2113) target = $region64
        $region63: #{tpu_custom_call.1} parent=59 // pred_region
          %s2116 = sand.u32 %s94, 1
          %s2117 = scalar_lea.sflag [#allocation4], %s2116
          %s2118 = sand.u32 %s94, 1
          %s2119 = smul.addr %s2118, 8
          %s2120 = scalar_lea.vmem [#allocation7], %s2119
          %2121 = dma.done %s2117, 128
        $region64: #{tpu_custom_call.1} parent=59 // pred_fallthru
          _
        // Predicated region
        $region65: #{tpu_custom_call.1} parent=59 // pred_check
          %p2122 = pneg %p135
        $region66: #{tpu_custom_call.1} parent=59 // pred_check_branch
          %2124 = sbr.rel (%p2122) target = $region68
        $region67: #{tpu_custom_call.1} parent=59 // pred_region
          %s2125 = sand.u32 %s120, 1
          %s2126 = scalar_lea.sflag [#allocation9], %s2125
          %s2127 = sand.u32 %s120, 1
          %s2128 = scalar_lea.vmem [#allocation8], %s2127
          %2129 = dma.done %s2126, 16
        $region68: #{tpu_custom_call.1} parent=59 // pred_fallthru
          _
      $region60: #{tpu_custom_call.1} parent=5 // pred_fallthru
        _
    $region6: #{tpu_custom_call.1} parent=1 // loop_footer
      %s26 = sadd.s32 1, %s22
    $region7: #{tpu_custom_call.1} parent=1 // loop_footer_branch
      %21 = sbr.rel target = $region3
    $region8: #{tpu_custom_call.1} parent=1 // loop_exit
      _
    %2130 = vsyncpa [#allocation3], 1
    %s2131 = scalar_lea.sflag [#allocation3], 1
    %2132 = vsyncpa %s2131, 1
    %2133 = vsyncpa [#allocation6], 1
    %s2134 = scalar_lea.sflag [#allocation6], 1
    %2135 = vsyncpa %s2134, 1
    %2136 = vsyncpa [#allocation4], 1
    %s2137 = scalar_lea.sflag [#allocation4], 1
    %2138 = vsyncpa %s2137, 1
    %2139 = vsyncpa [#allocation9], 1
    %s2140 = scalar_lea.sflag [#allocation9], 1
    %2141 = vsyncpa %s2140, 1

</llo_original>
